<compile_context>
chip_gen: v6e
topology: v6e:2x2x1
jax: 0.10.0
libtpu: 0.0.40
codegen_flags: <defaults>
</compile_context>

<pallas_src>
import math

import jax
import jax.numpy as jnp
import numpy as np
from jax.experimental import pallas as pl
from jax.experimental.pallas import tpu as pltpu

_VMEM_LIMIT_BYTES = 64 * 1024 * 1024   # explicit scoped-VMEM budget (<= physical on all gens)


# ---------------------------------------------------------------------------
# RoPE frequency table (mirrors rope_apply's freqs_i construction, real math).
# ---------------------------------------------------------------------------
def _rope_freqs_table(grid_sizes, freqs, head_dim):
    """Returns (cos, sin), each (L, head_dim//2) float32, L = f*h*w."""
    c = head_dim // 2
    f, h, w = grid_sizes
    s0, s1, s2 = c - 2 * (c // 3), c // 3, c // 3
    fr = jnp.real(freqs).astype(jnp.float32)
    fi = jnp.imag(freqs).astype(jnp.float32)

    def build(t):
        p0 = jnp.broadcast_to(t[:f, :s0][:, None, None, :], (f, h, w, s0))
        p1 = jnp.broadcast_to(t[:h, s0:s0 + s1][None, :, None, :], (f, h, w, s1))
        p2 = jnp.broadcast_to(t[:w, s0 + s1:s0 + s1 + s2][None, None, :, :], (f, h, w, s2))
        return jnp.concatenate([p0, p1, p2], axis=-1).reshape(f * h * w, c)

    return build(fr), build(fi)


# ---------------------------------------------------------------------------
# Kernel 1: packed QKV projection (reduction-tiled) + q/k RMSNorm + RoPE.
# ---------------------------------------------------------------------------
def _qkv_rope_kernel(eps, n, d):
    C = n * d
    d2 = d // 2

    def kernel(x_ref, w_ref, b_ref, gq_ref, gk_ref, cos_ref, sin_ref,
               q_ref, k_ref, v_ref, acc_ref):
        kc = pl.program_id(2)

        @pl.when(kc == 0)
        def _():
            acc_ref[...] = jnp.zeros_like(acc_ref)

        # Native-dtype MXU operands, f32 accumulation.
        acc_ref[...] += jnp.dot(x_ref[0], w_ref[...],
                                preferred_element_type=jnp.float32)

        @pl.when(kc == pl.num_programs(2) - 1)
        def _():
            t = acc_ref[...] + b_ref[...].astype(jnp.float32)      # (TL, 3C) f32
            cos = cos_ref[...]                                     # (TL, d2) f32
            sin = sin_ref[...]

            def rmsnorm(u, g_ref):
                ms = jnp.mean(u * u, axis=-1, keepdims=True)
                return u * jax.lax.rsqrt(ms + jnp.float32(eps)) * g_ref[...].astype(jnp.float32)

            qn = rmsnorm(t[:, :C], gq_ref)          # gq already carries 1/sqrt(d)
            kn = rmsnorm(t[:, C:2 * C], gk_ref)

            # Per-head split layout [reals | imags] -> rotation is two FMAs per half.
            q_parts, k_parts = [], []
            for h in range(n):
                re = slice(h * d, h * d + d2)
                im = slice(h * d + d2, (h + 1) * d)
                qr, qi = qn[:, re], qn[:, im]
                kr, ki = kn[:, re], kn[:, im]
                q_parts += [qr * cos - qi * sin, qi * cos + qr * sin]
                k_parts += [kr * cos - ki * sin, ki * cos + kr * sin]

            # Single lane-dense store per output.
            q_ref[0] = jnp.concatenate(q_parts, axis=-1).astype(q_ref.dtype)
            k_ref[0] = jnp.concatenate(k_parts, axis=-1).astype(k_ref.dtype)
            v_ref[0] = t[:, 2 * C:].astype(v_ref.dtype)

    return kernel


# ---------------------------------------------------------------------------
# Kernel 2: flash attention (online softmax) over lane-dense head-group blocks.
# ---------------------------------------------------------------------------
def _flash_attn_kernel(hg, d):
    def kernel(q_ref, k_ref, v_ref, o_ref, m_sc, l_sc, acc_sc):
        ki = pl.program_id(3)

        @pl.when(ki == 0)
        def _():
            m_sc[...] = jnp.full(m_sc.shape, -jnp.inf, dtype=jnp.float32)
            l_sc[...] = jnp.zeros(l_sc.shape, dtype=jnp.float32)
            acc_sc[...] = jnp.zeros(acc_sc.shape, dtype=jnp.float32)

        q = q_ref[0]     # (TQ, hg*d) native dtype; 1/sqrt(d) already folded into q
        k = k_ref[0]     # (TK, hg*d)
        v = v_ref[0]     # (TK, hg*d)

        for h in range(hg):
            sl = slice(h * d, (h + 1) * d)
            s = jax.lax.dot_general(q[:, sl], k[:, sl], (((1,), (1,)), ((), ())),
                                    preferred_element_type=jnp.float32)   # (TQ, TK)
            m_prev = m_sc[h]                                              # (TQ, 1)
            m_new = jnp.maximum(m_prev, s.max(axis=-1, keepdims=True))
            alpha = jnp.exp(m_prev - m_new)
            p = jnp.exp(s - m_new)
            l_sc[h] = alpha * l_sc[h] + p.sum(axis=-1, keepdims=True)
            acc_sc[:, sl] = alpha * acc_sc[:, sl] + jnp.dot(
                p.astype(v.dtype), v[:, sl], preferred_element_type=jnp.float32)
            m_sc[h] = m_new

        @pl.when(ki == pl.num_programs(3) - 1)
        def _():
            outs = [acc_sc[:, h * d:(h + 1) * d] * pl.reciprocal(l_sc[h], approx=True)
                    for h in range(hg)]
            o_ref[0] = jnp.concatenate(outs, axis=-1).astype(o_ref.dtype)

    return kernel


# ---------------------------------------------------------------------------
# Kernel 3: output projection (reduction-tiled).
# ---------------------------------------------------------------------------
def _out_proj_kernel(y_ref, w_ref, b_ref, o_ref, acc_ref):
    kc = pl.program_id(2)

    @pl.when(kc == 0)
    def _():
        acc_ref[...] = jnp.zeros_like(acc_ref)

    acc_ref[...] += jnp.dot(y_ref[0], w_ref[...], preferred_element_type=jnp.float32)

    @pl.when(kc == pl.num_programs(2) - 1)
    def _():
        o_ref[0] = (acc_ref[...] + b_ref[...].astype(jnp.float32)).astype(o_ref.dtype)


# ---------------------------------------------------------------------------
# Wrapper: full WanSelfAttention forward.
# ---------------------------------------------------------------------------
def wan_self_attention(x, params, grid_sizes, freqs, *, num_heads, eps=1e-6,
                       tile_l=256, tile_q=256, tile_k=512, tile_c=512,
                       heads_per_block=None):
    """x: [B, L, C]; params: dict of wq/bq/gq/wk/bk/gk/wv/bv/wo/bo; freqs: complex [>=max(f,h,w), d//2]."""
    B, L, C = x.shape
    n = num_heads
    d = C // n
    d2 = d // 2
    assert L == grid_sizes[0] * grid_sizes[1] * grid_sizes[2]

    TL = min(tile_l, L)
    TQ = min(tile_q, L)
    TK = min(tile_k, L)
    TC = min(tile_c, C)
    assert L % TL == 0 and L % TQ == 0 and L % TK == 0 and C % TC == 0

    if heads_per_block is None:
        heads_per_block = min(n, max(1, 512 // d))   # lane-dense head group (>=128 channels)
    HG = int(heads_per_block)
    while n % HG:
        HG -= 1
    CB = HG * d

    # Per-head split permutation: within each head, [r0..r_{d2-1} | i0..i_{d2-1}].
    jidx = np.arange(d2)
    per_head = np.concatenate([2 * jidx, 2 * jidx + 1])              # length d
    perm = (np.arange(n)[:, None] * d + per_head[None, :]).reshape(-1)   # length C

    scale = 1.0 / math.sqrt(d)

    # Packed QKV weight / bias; q/k columns permuted, attention scale folded into gq.
    w_qkv = jnp.concatenate([params["wq"][:, perm], params["wk"][:, perm], params["wv"]], axis=1)
    b_qkv = jnp.concatenate([params["bq"][perm], params["bk"][perm], params["bv"]]).reshape(1, 3 * C)
    gq_p = (params["gq"] * scale)[perm].reshape(1, C)
    gk_p = params["gk"][perm].reshape(1, C)
    wo = params["wo"]
    bo = params["bo"].reshape(1, C)

    cos_tab, sin_tab = _rope_freqs_table(grid_sizes, freqs, d)       # compact (L, d2) f32

    cparams_proj = pltpu.CompilerParams(
        dimension_semantics=("parallel", "parallel", "arbitrary"),
        vmem_limit_bytes=_VMEM_LIMIT_BYTES)
    cparams_flash = pltpu.CompilerParams(
        dimension_semantics=("parallel", "parallel", "parallel", "arbitrary"),
        vmem_limit_bytes=_VMEM_LIMIT_BYTES)

    # ---------------- Kernel 1: fused QKV + norm + RoPE ----------------
    slab_spec = pl.BlockSpec((1, TL, C), lambda b, l, kc: (b, l, 0))
    q, k, v = pl.pallas_call(
        _qkv_rope_kernel(eps, n, d),
        out_shape=(jax.ShapeDtypeStruct((B, L, C), x.dtype),
                   jax.ShapeDtypeStruct((B, L, C), x.dtype),
                   jax.ShapeDtypeStruct((B, L, C), x.dtype)),
        grid_spec=pl.GridSpec(
            grid=(B, L // TL, C // TC),
            in_specs=[
                pl.BlockSpec((1, TL, TC), lambda b, l, kc: (b, l, kc)),    # x
                pl.BlockSpec((TC, 3 * C), lambda b, l, kc: (kc, 0)),       # packed W slab
                pl.BlockSpec((1, 3 * C), lambda b, l, kc: (0, 0)),         # packed bias
                pl.BlockSpec((1, C), lambda b, l, kc: (0, 0)),             # gq (scaled)
                pl.BlockSpec((1, C), lambda b, l, kc: (0, 0)),             # gk
                pl.BlockSpec((TL, d2), lambda b, l, kc: (l, 0)),           # cos
                pl.BlockSpec((TL, d2), lambda b, l, kc: (l, 0)),           # sin
            ],
            out_specs=(slab_spec, slab_spec, slab_spec),
            scratch_shapes=[pltpu.VMEM((TL, 3 * C), jnp.float32)],
        ),
        compiler_params=cparams_proj,
    )(x, w_qkv, b_qkv, gq_p, gk_p, cos_tab, sin_tab)

    # ---------------- Kernel 2: flash attention ----------------
    y = pl.pallas_call(
        _flash_attn_kernel(HG, d),
        out_shape=jax.ShapeDtypeStruct((B, L, C), x.dtype),
        grid_spec=pl.GridSpec(
            grid=(B, n // HG, L // TQ, L // TK),
            in_specs=[
                pl.BlockSpec((1, TQ, CB), lambda b, hg, qi, ki: (b, qi, hg)),
                pl.BlockSpec((1, TK, CB), lambda b, hg, qi, ki: (b, ki, hg)),
                pl.BlockSpec((1, TK, CB), lambda b, hg, qi, ki: (b, ki, hg)),
            ],
            out_specs=pl.BlockSpec((1, TQ, CB), lambda b, hg, qi, ki: (b, qi, hg)),
            scratch_shapes=[pltpu.VMEM((HG, TQ, 1), jnp.float32),
                            pltpu.VMEM((HG, TQ, 1), jnp.float32),
                            pltpu.VMEM((TQ, CB), jnp.float32)],
        ),
        compiler_params=cparams_flash,
    )(q, k, v)

    # ---------------- Kernel 3: output projection ----------------
    out = pl.pallas_call(
        _out_proj_kernel,
        out_shape=jax.ShapeDtypeStruct((B, L, C), x.dtype),
        grid_spec=pl.GridSpec(
            grid=(B, L // TL, C // TC),
            in_specs=[
                pl.BlockSpec((1, TL, TC), lambda b, l, kc: (b, l, kc)),
                pl.BlockSpec((TC, C), lambda b, l, kc: (kc, 0)),
                pl.BlockSpec((1, C), lambda b, l, kc: (0, 0)),
            ],
            out_specs=pl.BlockSpec((1, TL, C), lambda b, l, kc: (b, l, 0)),
            scratch_shapes=[pltpu.VMEM((TL, C), jnp.float32)],
        ),
        compiler_params=cparams_proj,
    )(y, wo, bo)

    return out


# ---------------------------------------------------------------------------
# Pure-JAX reference (mirrors the PyTorch module: Linear -> fast_rms_norm ->
# rope_apply (interleaved complex) -> scaled-dot-product attention -> Linear).
# ---------------------------------------------------------------------------
def _rope_ref(xh, grid_sizes, freqs):
    B, L, n, d = xh.shape
    c = d // 2
    cos_tab, sin_tab = _rope_freqs_table(grid_sizes, freqs, d)     # (L, c)
    xr = xh.astype(jnp.float32).reshape(B, L, n, c, 2)
    re, im = xr[..., 0], xr[..., 1]
    fr = cos_tab[None, :, None, :]
    fi = sin_tab[None, :, None, :]
    yr = re * fr - im * fi
    yi = re * fi + im * fr
    return jnp.stack([yr, yi], axis=-1).reshape(B, L, n, d)


def _ref_forward(x, p, grid_sizes, freqs, num_heads, eps):
    B, L, C = x.shape
    n = num_heads
    d = C // n

    def rms(t, g):
        t = t.astype(jnp.float32)
        return t * jax.lax.rsqrt(jnp.mean(t * t, axis=-1, keepdims=True) + eps) * g

    q = rms(x @ p["wq"] + p["bq"], p["gq"]).reshape(B, L, n, d)
    k = rms(x @ p["wk"] + p["bk"], p["gk"]).reshape(B, L, n, d)
    v = (x @ p["wv"] + p["bv"]).reshape(B, L, n, d)
    q = _rope_ref(q, grid_sizes, freqs)
    k = _rope_ref(k, grid_sizes, freqs)
    s = jnp.einsum("blnd,bmnd->bnlm", q, k) * (1.0 / math.sqrt(d))
    a = jax.nn.softmax(s, axis=-1)
    o = jnp.einsum("bnlm,bmnd->blnd", a, v).reshape(B, L, C)
    return o @ p["wo"] + p["bo"]


if __name__ == "__main__":
    B = 2
    num_heads = 4
    head_dim = 32
    C = num_heads * head_dim           # 128 -> lane-dense
    grid_sizes = (2, 4, 8)             # F, H, W
    L = grid_sizes[0] * grid_sizes[1] * grid_sizes[2]   # 64
    eps = 1e-6

    key = jax.random.PRNGKey(0)
    ks = jax.random.split(key, 12)
    x = jax.random.normal(ks[0], (B, L, C), dtype=jnp.float32)

    def w_init(k):
        return 0.05 * jax.random.normal(k, (C, C), dtype=jnp.float32)

    def b_init(k):
        return 0.1 * jax.random.normal(k, (C,), dtype=jnp.float32)

    params = dict(
        wq=w_init(ks[1]), bq=b_init(ks[2]),
        wk=w_init(ks[3]), bk=b_init(ks[4]),
        wv=w_init(ks[5]), bv=b_init(ks[6]),
        wo=w_init(ks[7]), bo=b_init(ks[8]),
        gq=1.0 + 0.1 * jax.random.normal(ks[9], (C,), dtype=jnp.float32),
        gk=1.0 + 0.1 * jax.random.normal(ks[10], (C,), dtype=jnp.float32),
    )

    # Complex RoPE freqs table (unit magnitude), shape (1024, head_dim // 2).
    c = head_dim // 2
    pos = jnp.arange(1024, dtype=jnp.float32)[:, None]
    inv = (1.0 / (10000.0 ** (jnp.arange(c, dtype=jnp.float32) / c)))[None, :]
    ang = pos * inv
    freqs = jax.lax.complex(jnp.cos(ang), jnp.sin(ang))

    out = wan_self_attention(x, params, grid_sizes, freqs,
                             num_heads=num_heads, eps=eps)
    out = jax.block_until_ready(out)

    ref = jax.block_until_ready(_ref_forward(x, params, grid_sizes, freqs, num_heads, eps))

    assert out.shape == (B, L, C) and out.dtype == x.dtype
    max_err = float(jnp.max(jnp.abs(out - ref)))
    assert jnp.allclose(out, ref, atol=3e-2, rtol=3e-2), f"max abs err {max_err}"
    print("KERNEL_OK")
</pallas_src>

<mosaic_0001>
module attributes {stable_mosaic.version = 11 : i64} {
  func.func @kernel(%arg0: i32, %arg1: i32, %arg2: i32, %arg3: memref<1x64x128xf32, #tpu.memory_space<vmem>>, %arg4: memref<128x384xf32, #tpu.memory_space<vmem>>, %arg5: memref<1x384xf32, #tpu.memory_space<vmem>>, %arg6: memref<1x128xf32, #tpu.memory_space<vmem>>, %arg7: memref<1x128xf32, #tpu.memory_space<vmem>>, %arg8: memref<64x16xf32, #tpu.memory_space<vmem>>, %arg9: memref<64x16xf32, #tpu.memory_space<vmem>>, %arg10: memref<1x64x128xf32, #tpu.memory_space<vmem>>, %arg11: memref<1x64x128xf32, #tpu.memory_space<vmem>>, %arg12: memref<1x64x128xf32, #tpu.memory_space<vmem>>, %arg13: memref<64x384xf32, #tpu.memory_space<vmem>>) attributes {dimension_semantics = [#tpu.dimension_semantics<parallel>, #tpu.dimension_semantics<parallel>, #tpu.dimension_semantics<arbitrary>], iteration_bounds = array<i64: 2, 1, 1>, scalar_prefetch = 0 : i64, scratch_operands = 1 : i64, tpu.core_type = #tpu.core_type<tc>, window_params = [{transform_indices = @transform_0, window_bounds = array<i64: 1, 64, 128>}, {transform_indices = @transform_1, window_bounds = array<i64: 128, 384>}, {pipeline_mode = #tpu.pipeline_mode<synchronous>, transform_indices = @transform_2, window_bounds = array<i64: 1, 384>}, {pipeline_mode = #tpu.pipeline_mode<synchronous>, transform_indices = @transform_3, window_bounds = array<i64: 1, 128>}, {pipeline_mode = #tpu.pipeline_mode<synchronous>, transform_indices = @transform_4, window_bounds = array<i64: 1, 128>}, {transform_indices = @transform_5, window_bounds = array<i64: 64, 16>}, {transform_indices = @transform_6, window_bounds = array<i64: 64, 16>}, {transform_indices = @transform_7, window_bounds = array<i64: 1, 64, 128>}, {transform_indices = @transform_8, window_bounds = array<i64: 1, 64, 128>}, {transform_indices = @transform_9, window_bounds = array<i64: 1, 64, 128>}]} {
    %c0_i32 = arith.constant 0 : i32
    %0 = arith.cmpi eq, %arg2, %c0_i32 : i32
    %1 = arith.extui %0 : i1 to i32
    %c0_i32_0 = arith.constant 0 : i32
    %2 = arith.cmpi ne, %1, %c0_i32_0 : i32
    scf.if %2 {
      %cst_11 = arith.constant 0.000000e+00 : f32
      %13 = vector.broadcast %cst_11 : f32 to vector<64x384xf32>
      %c0_12 = arith.constant 0 : index
      %c0_13 = arith.constant 0 : index
      %14 = vector.load %arg13[%c0_12, %c0_13] : memref<64x384xf32, #tpu.memory_space<vmem>>, vector<64x384xf32>
      tpu.vector_store %arg13[%c0_12, %c0_13], %13 {strides = array<i32>} : memref<64x384xf32, #tpu.memory_space<vmem>>, vector<64x384xf32>,
    } else {
    }
    %c0 = arith.constant 0 : index
    %c0_1 = arith.constant 0 : index
    %3 = vector.load %arg13[%c0, %c0_1] : memref<64x384xf32, #tpu.memory_space<vmem>>, vector<64x384xf32>
    %c0_2 = arith.constant 0 : index
    %c0_3 = arith.constant 0 : index
    %c0_4 = arith.constant 0 : index
    %4 = vector.load %arg3[%c0_2, %c0_3, %c0_4] : memref<1x64x128xf32, #tpu.memory_space<vmem>>, vector<1x64x128xf32>
    %5 = vector.shape_cast %4 : vector<1x64x128xf32> to vector<64x128xf32>
    %c0_5 = arith.constant 0 : index
    %c0_6 = arith.constant 0 : index
    %6 = vector.load %arg4[%c0_5, %c0_6] : memref<128x384xf32, #tpu.memory_space<vmem>>, vector<128x384xf32>
    %cst = arith.constant dense<0.000000e+00> : vector<64x384xf32>
    %7 = tpu.matmul %5, %6, %cst {dimension_numbers = #tpu.dot_dimension_numbers<[1], [0], [0], [1], [0, 0, 1, 1], [], []>} : vector<64x128xf32>, vector<128x384xf32>, vector<64x384xf32> -> vector<64x384xf32>
    %8 = arith.addf %3, %7 : vector<64x384xf32>
    %c0_7 = arith.constant 0 : index
    %c0_8 = arith.constant 0 : index
    %9 = vector.load %arg13[%c0_7, %c0_8] : memref<64x384xf32, #tpu.memory_space<vmem>>, vector<64x384xf32>
    tpu.vector_store %arg13[%c0_7, %c0_8], %8 {strides = array<i32>} : memref<64x384xf32, #tpu.memory_space<vmem>>, vector<64x384xf32>,
    %c0_i32_9 = arith.constant 0 : i32
    %10 = arith.cmpi eq, %arg2, %c0_i32_9 : i32
    %11 = arith.extui %10 : i1 to i32
    %c0_i32_10 = arith.constant 0 : i32
    %12 = arith.cmpi ne, %11, %c0_i32_10 : i32
    scf.if %12 {
      %c0_11 = arith.constant 0 : index
      %c0_12 = arith.constant 0 : index
      %13 = vector.load %arg13[%c0_11, %c0_12] : memref<64x384xf32, #tpu.memory_space<vmem>>, vector<64x384xf32>
      %c0_13 = arith.constant 0 : index
      %c0_14 = arith.constant 0 : index
      %14 = vector.load %arg5[%c0_13, %c0_14] : memref<1x384xf32, #tpu.memory_space<vmem>>, vector<1x384xf32>
      %15 = vector.broadcast %14 : vector<1x384xf32> to vector<64x384xf32>
      %16 = arith.addf %13, %15 : vector<64x384xf32>
      %c0_15 = arith.constant 0 : index
      %c0_16 = arith.constant 0 : index
      %17 = vector.load %arg8[%c0_15, %c0_16] : memref<64x16xf32, #tpu.memory_space<vmem>>, vector<64x16xf32>
      %c0_17 = arith.constant 0 : index
      %c0_18 = arith.constant 0 : index
      %18 = vector.load %arg9[%c0_17, %c0_18] : memref<64x16xf32, #tpu.memory_space<vmem>>, vector<64x16xf32>
      %19 = vector.extract_strided_slice %16 {offsets = [0, 0], sizes = [64, 128], strides = [1, 1]} : vector<64x384xf32> to vector<64x128xf32>
      %20 = arith.mulf %19, %19 : vector<64x128xf32>
      %cst_19 = arith.constant dense<0.000000e+00> : vector<64xf32>
      %21 = vector.multi_reduction <add>, %20, %cst_19 [1] : vector<64x128xf32> to vector<64xf32>
      %22 = vector.shape_cast %21 : vector<64xf32> to vector<64x1xf32>
      %cst_20 = arith.constant 1.280000e+02 : f32
      %23 = vector.broadcast %cst_20 : f32 to vector<64x1xf32>
      %24 = arith.divf %22, %23 : vector<64x1xf32>
      %cst_21 = arith.constant 9.99999997E-7 : f32
      %25 = vector.broadcast %cst_21 : f32 to vector<64x1xf32>
      %26 = arith.addf %24, %25 : vector<64x1xf32>
      %27 = math.rsqrt %26 : vector<64x1xf32>
      %28 = vector.broadcast %27 : vector<64x1xf32> to vector<64x128xf32>
      %29 = arith.mulf %19, %28 : vector<64x128xf32>
      %c0_22 = arith.constant 0 : index
      %c0_23 = arith.constant 0 : index
      %30 = vector.load %arg6[%c0_22, %c0_23] : memref<1x128xf32, #tpu.memory_space<vmem>>, vector<1x128xf32>
      %31 = vector.broadcast %30 : vector<1x128xf32> to vector<64x128xf32>
      %32 = arith.mulf %29, %31 : vector<64x128xf32>
      %33 = vector.extract_strided_slice %16 {offsets = [0, 128], sizes = [64, 128], strides = [1, 1]} : vector<64x384xf32> to vector<64x128xf32>
      %34 = arith.mulf %33, %33 : vector<64x128xf32>
      %cst_24 = arith.constant dense<0.000000e+00> : vector<64xf32>
      %35 = vector.multi_reduction <add>, %34, %cst_24 [1] : vector<64x128xf32> to vector<64xf32>
      %36 = vector.shape_cast %35 : vector<64xf32> to vector<64x1xf32>
      %cst_25 = arith.constant 1.280000e+02 : f32
      %37 = vector.broadcast %cst_25 : f32 to vector<64x1xf32>
      %38 = arith.divf %36, %37 : vector<64x1xf32>
      %cst_26 = arith.constant 9.99999997E-7 : f32
      %39 = vector.broadcast %cst_26 : f32 to vector<64x1xf32>
      %40 = arith.addf %38, %39 : vector<64x1xf32>
      %41 = math.rsqrt %40 : vector<64x1xf32>
      %42 = vector.broadcast %41 : vector<64x1xf32> to vector<64x128xf32>
      %43 = arith.mulf %33, %42 : vector<64x128xf32>
      %c0_27 = arith.constant 0 : index
      %c0_28 = arith.constant 0 : index
      %44 = vector.load %arg7[%c0_27, %c0_28] : memref<1x128xf32, #tpu.memory_space<vmem>>, vector<1x128xf32>
      %45 = vector.broadcast %44 : vector<1x128xf32> to vector<64x128xf32>
      %46 = arith.mulf %43, %45 : vector<64x128xf32>
      %47 = vector.extract_strided_slice %32 {offsets = [0, 0], sizes = [64, 16], strides = [1, 1]} : vector<64x128xf32> to vector<64x16xf32>
      %48 = vector.extract_strided_slice %32 {offsets = [0, 16], sizes = [64, 16], strides = [1, 1]} : vector<64x128xf32> to vector<64x16xf32>
      %49 = vector.extract_strided_slice %46 {offsets = [0, 0], sizes = [64, 16], strides = [1, 1]} : vector<64x128xf32> to vector<64x16xf32>
      %50 = vector.extract_strided_slice %46 {offsets = [0, 16], sizes = [64, 16], strides = [1, 1]} : vector<64x128xf32> to vector<64x16xf32>
      %51 = arith.mulf %47, %17 : vector<64x16xf32>
      %52 = arith.mulf %48, %18 : vector<64x16xf32>
      %53 = arith.subf %51, %52 : vector<64x16xf32>
      %54 = arith.mulf %48, %17 : vector<64x16xf32>
      %55 = arith.mulf %47, %18 : vector<64x16xf32>
      %56 = arith.addf %54, %55 : vector<64x16xf32>
      %57 = arith.mulf %49, %17 : vector<64x16xf32>
      %58 = arith.mulf %50, %18 : vector<64x16xf32>
      %59 = arith.subf %57, %58 : vector<64x16xf32>
      %60 = arith.mulf %50, %17 : vector<64x16xf32>
      %61 = arith.mulf %49, %18 : vector<64x16xf32>
      %62 = arith.addf %60, %61 : vector<64x16xf32>
      %63 = vector.extract_strided_slice %32 {offsets = [0, 32], sizes = [64, 16], strides = [1, 1]} : vector<64x128xf32> to vector<64x16xf32>
      %64 = vector.extract_strided_slice %32 {offsets = [0, 48], sizes = [64, 16], strides = [1, 1]} : vector<64x128xf32> to vector<64x16xf32>
      %65 = vector.extract_strided_slice %46 {offsets = [0, 32], sizes = [64, 16], strides = [1, 1]} : vector<64x128xf32> to vector<64x16xf32>
      %66 = vector.extract_strided_slice %46 {offsets = [0, 48], sizes = [64, 16], strides = [1, 1]} : vector<64x128xf32> to vector<64x16xf32>
      %67 = arith.mulf %63, %17 : vector<64x16xf32>
      %68 = arith.mulf %64, %18 : vector<64x16xf32>
      %69 = arith.subf %67, %68 : vector<64x16xf32>
      %70 = arith.mulf %64, %17 : vector<64x16xf32>
      %71 = arith.mulf %63, %18 : vector<64x16xf32>
      %72 = arith.addf %70, %71 : vector<64x16xf32>
      %73 = arith.mulf %65, %17 : vector<64x16xf32>
      %74 = arith.mulf %66, %18 : vector<64x16xf32>
      %75 = arith.subf %73, %74 : vector<64x16xf32>
      %76 = arith.mulf %66, %17 : vector<64x16xf32>
      %77 = arith.mulf %65, %18 : vector<64x16xf32>
      %78 = arith.addf %76, %77 : vector<64x16xf32>
      %79 = vector.extract_strided_slice %32 {offsets = [0, 64], sizes = [64, 16], strides = [1, 1]} : vector<64x128xf32> to vector<64x16xf32>
      %80 = vector.extract_strided_slice %32 {offsets = [0, 80], sizes = [64, 16], strides = [1, 1]} : vector<64x128xf32> to vector<64x16xf32>
      %81 = vector.extract_strided_slice %46 {offsets = [0, 64], sizes = [64, 16], strides = [1, 1]} : vector<64x128xf32> to vector<64x16xf32>
      %82 = vector.extract_strided_slice %46 {offsets = [0, 80], sizes = [64, 16], strides = [1, 1]} : vector<64x128xf32> to vector<64x16xf32>
      %83 = arith.mulf %79, %17 : vector<64x16xf32>
      %84 = arith.mulf %80, %18 : vector<64x16xf32>
      %85 = arith.subf %83, %84 : vector<64x16xf32>
      %86 = arith.mulf %80, %17 : vector<64x16xf32>
      %87 = arith.mulf %79, %18 : vector<64x16xf32>
      %88 = arith.addf %86, %87 : vector<64x16xf32>
      %89 = arith.mulf %81, %17 : vector<64x16xf32>
      %90 = arith.mulf %82, %18 : vector<64x16xf32>
      %91 = arith.subf %89, %90 : vector<64x16xf32>
      %92 = arith.mulf %82, %17 : vector<64x16xf32>
      %93 = arith.mulf %81, %18 : vector<64x16xf32>
      %94 = arith.addf %92, %93 : vector<64x16xf32>
      %95 = vector.extract_strided_slice %32 {offsets = [0, 96], sizes = [64, 16], strides = [1, 1]} : vector<64x128xf32> to vector<64x16xf32>
      %96 = vector.extract_strided_slice %32 {offsets = [0, 112], sizes = [64, 16], strides = [1, 1]} : vector<64x128xf32> to vector<64x16xf32>
      %97 = vector.extract_strided_slice %46 {offsets = [0, 96], sizes = [64, 16], strides = [1, 1]} : vector<64x128xf32> to vector<64x16xf32>
      %98 = vector.extract_strided_slice %46 {offsets = [0, 112], sizes = [64, 16], strides = [1, 1]} : vector<64x128xf32> to vector<64x16xf32>
      %99 = arith.mulf %95, %17 : vector<64x16xf32>
      %100 = arith.mulf %96, %18 : vector<64x16xf32>
      %101 = arith.subf %99, %100 : vector<64x16xf32>
      %102 = arith.mulf %96, %17 : vector<64x16xf32>
      %103 = arith.mulf %95, %18 : vector<64x16xf32>
      %104 = arith.addf %102, %103 : vector<64x16xf32>
      %105 = arith.mulf %97, %17 : vector<64x16xf32>
      %106 = arith.mulf %98, %18 : vector<64x16xf32>
      %107 = arith.subf %105, %106 : vector<64x16xf32>
      %108 = arith.mulf %98, %17 : vector<64x16xf32>
      %109 = arith.mulf %97, %18 : vector<64x16xf32>
      %110 = arith.addf %108, %109 : vector<64x16xf32>
      %111 = tpu.concatenate %53, %56, %69, %72, %85, %88, %101, %104 in 1 : vector<64x16xf32>, vector<64x16xf32>, vector<64x16xf32>, vector<64x16xf32>, vector<64x16xf32>, vector<64x16xf32>, vector<64x16xf32>, vector<64x16xf32> -> vector<64x128xf32>
      %c0_29 = arith.constant 0 : index
      %c0_30 = arith.constant 0 : index
      %c0_31 = arith.constant 0 : index
      %112 = vector.load %arg10[%c0_29, %c0_30, %c0_31] : memref<1x64x128xf32, #tpu.memory_space<vmem>>, vector<1x64x128xf32>
      %113 = vector.shape_cast %112 : vector<1x64x128xf32> to vector<64x128xf32>
      %114 = vector.shape_cast %111 : vector<64x128xf32> to vector<1x64x128xf32>
      tpu.vector_store %arg10[%c0_29, %c0_30, %c0_31], %114 {strides = array<i32>} : memref<1x64x128xf32, #tpu.memory_space<vmem>>, vector<1x64x128xf32>,
      %115 = tpu.concatenate %59, %62, %75, %78, %91, %94, %107, %110 in 1 : vector<64x16xf32>, vector<64x16xf32>, vector<64x16xf32>, vector<64x16xf32>, vector<64x16xf32>, vector<64x16xf32>, vector<64x16xf32>, vector<64x16xf32> -> vector<64x128xf32>
      %c0_32 = arith.constant 0 : index
      %c0_33 = arith.constant 0 : index
      %c0_34 = arith.constant 0 : index
      %116 = vector.load %arg11[%c0_32, %c0_33, %c0_34] : memref<1x64x128xf32, #tpu.memory_space<vmem>>, vector<1x64x128xf32>
      %117 = vector.shape_cast %116 : vector<1x64x128xf32> to vector<64x128xf32>
      %118 = vector.shape_cast %115 : vector<64x128xf32> to vector<1x64x128xf32>
      tpu.vector_store %arg11[%c0_32, %c0_33, %c0_34], %118 {strides = array<i32>} : memref<1x64x128xf32, #tpu.memory_space<vmem>>, vector<1x64x128xf32>,
      %119 = vector.extract_strided_slice %16 {offsets = [0, 256], sizes = [64, 128], strides = [1, 1]} : vector<64x384xf32> to vector<64x128xf32>
      %c0_35 = arith.constant 0 : index
      %c0_36 = arith.constant 0 : index
      %c0_37 = arith.constant 0 : index
      %120 = vector.load %arg12[%c0_35, %c0_36, %c0_37] : memref<1x64x128xf32, #tpu.memory_space<vmem>>, vector<1x64x128xf32>
      %121 = vector.shape_cast %120 : vector<1x64x128xf32> to vector<64x128xf32>
      %122 = vector.shape_cast %119 : vector<64x128xf32> to vector<1x64x128xf32>
      tpu.vector_store %arg12[%c0_35, %c0_36, %c0_37], %122 {strides = array<i32>} : memref<1x64x128xf32, #tpu.memory_space<vmem>>, vector<1x64x128xf32>,
    } else {
    }
    return
  }
  func.func @transform_0(%arg0: i32, %arg1: i32, %arg2: i32) -> (i32, i32, i32) {
    %c0_i32 = arith.constant 0 : i32
    return %arg0, %arg1, %arg2 : i32, i32, i32
  }
  func.func @transform_1(%arg0: i32, %arg1: i32, %arg2: i32) -> (i32, i32) {
    %c0_i32 = arith.constant 0 : i32
    %c0_i32_0 = arith.constant 0 : i32
    return %arg2, %c0_i32 : i32, i32
  }
  func.func @transform_2(%arg0: i32, %arg1: i32, %arg2: i32) -> (i32, i32) {
    %c0_i32 = arith.constant 0 : i32
    %c0_i32_0 = arith.constant 0 : i32
    %c0_i32_1 = arith.constant 0 : i32
    return %c0_i32, %c0_i32_0 : i32, i32
  }
  func.func @transform_3(%arg0: i32, %arg1: i32, %arg2: i32) -> (i32, i32) {
    %c0_i32 = arith.constant 0 : i32
    %c0_i32_0 = arith.constant 0 : i32
    %c0_i32_1 = arith.constant 0 : i32
    return %c0_i32, %c0_i32_0 : i32, i32
  }
  func.func @transform_4(%arg0: i32, %arg1: i32, %arg2: i32) -> (i32, i32) {
    %c0_i32 = arith.constant 0 : i32
    %c0_i32_0 = arith.constant 0 : i32
    %c0_i32_1 = arith.constant 0 : i32
    return %c0_i32, %c0_i32_0 : i32, i32
  }
  func.func @transform_5(%arg0: i32, %arg1: i32, %arg2: i32) -> (i32, i32) {
    %c0_i32 = arith.constant 0 : i32
    %c0_i32_0 = arith.constant 0 : i32
    return %arg1, %c0_i32 : i32, i32
  }
  func.func @transform_6(%arg0: i32, %arg1: i32, %arg2: i32) -> (i32, i32) {
    %c0_i32 = arith.constant 0 : i32
    %c0_i32_0 = arith.constant 0 : i32
    return %arg1, %c0_i32 : i32, i32
  }
  func.func @transform_7(%arg0: i32, %arg1: i32, %arg2: i32) -> (i32, i32, i32) {
    %c0_i32 = arith.constant 0 : i32
    %c0_i32_0 = arith.constant 0 : i32
    return %arg0, %arg1, %c0_i32 : i32, i32, i32
  }
  func.func @transform_8(%arg0: i32, %arg1: i32, %arg2: i32) -> (i32, i32, i32) {
    %c0_i32 = arith.constant 0 : i32
    %c0_i32_0 = arith.constant 0 : i32
    return %arg0, %arg1, %c0_i32 : i32, i32, i32
  }
  func.func @transform_9(%arg0: i32, %arg1: i32, %arg2: i32) -> (i32, i32, i32) {
    %c0_i32 = arith.constant 0 : i32
    %c0_i32_0 = arith.constant 0 : i32
    return %arg0, %arg1, %c0_i32 : i32, i32, i32
  }
}

</mosaic_0001>

<llo_original>
// kernel: tpu_custom_call.1
$region0: #{tpu_custom_call.1}
  #allocation0 [shape = 'u32[]', space=smem, size = 0x4, offset = 0x4, fixed_abs, tag = 'smem constant byte address 0x4 - core index']
  #allocation1 [shape = 'u32[144,128]{1,0:T(1,128)}', space=vmem, size = 0x12000, scoped, tag = 'internal scratch']
  #allocation2 [shape = 'f32[64,384]{1,0:T(8,128)}', space=vmem, size = 0x18000, scoped, tag = 'scratch operand']
  %s0 = inlined_call_operand.vmem [shape: f32[2,64,128], index: 0, kind: input, shape index: {}]
  %s1 = inlined_call_operand.hbm [shape: f32[128,384], index: 1, kind: input, shape index: {}]
  %s2 = inlined_call_operand.vmem [shape: f32[1,384], index: 2, kind: input, shape index: {}]
  %s3 = inlined_call_operand.vmem [shape: f32[1,128], index: 3, kind: input, shape index: {}]
  %s4 = inlined_call_operand.vmem [shape: f32[1,128], index: 4, kind: input, shape index: {}]
  %s5 = inlined_call_operand.vmem [shape: f32[64,16], index: 5, kind: input, shape index: {}]
  %s6 = inlined_call_operand.vmem [shape: f32[64,16], index: 6, kind: input, shape index: {}]
  %s7 = inlined_call_operand.hbm [shape: f32[2,64,128], index: 7, kind: output, shape index: {0}]
  %s8 = inlined_call_operand.hbm [shape: f32[2,64,128], index: 8, kind: output, shape index: {1}]
  %s9 = inlined_call_operand.hbm [shape: f32[2,64,128], index: 9, kind: output, shape index: {2}]
  %10 = xla_tuple %s7, %s8, %s9
  %s11 = sld [smem:[#allocation0]]
  $region89: #{tpu_custom_call.1} parent=0
    _
  %s13 = ssub.s32 1, %s11
  %s14 = scalar_select 0, %s13, %s11
  $region1: #{tpu_custom_call.1} parent=0
    #allocation3 [shape = 'u8[196608]{0}', space=vmem, size = 0x30000, scoped, tag = 'input window, operand 1, single buffered']
    #allocation4 [shape = 's32[2]{0}', space=sflag, size = 0x8, scoped, tag = 'scoped memory for tpu_custom_call.1']
    #allocation5 [shape = 's32[2]{0}', space=sflag, size = 0x8, scoped, tag = 'scoped memory for tpu_custom_call.1']
    #allocation6 [shape = 'u8[65536]{0}', space=vmem, size = 0x10000, scoped, tag = 'output window, operand 0']
    #allocation7 [shape = 'u8[65536]{0}', space=vmem, size = 0x10000, scoped, tag = 'output window, operand 1']
    #allocation8 [shape = 's32[2]{0}', space=sflag, size = 0x8, scoped, tag = 'scoped memory for tpu_custom_call.1']
    #allocation9 [shape = 'u8[65536]{0}', space=vmem, size = 0x10000, scoped, tag = 'output window, operand 2']
    %15 = vsyncpa [#allocation4], 0
    %16 = vsyncpa [#allocation5], 0
    %s17 = scalar_lea.sflag [#allocation5], 1
    %18 = vsyncpa %s17, 0
    %19 = vsyncpa [#allocation8], 0
    %s20 = scalar_lea.sflag [#allocation8], 1
    %21 = vsyncpa %s20, 0
    loop: start=0, step=1, limit=4
    $region2: #{tpu_custom_call.1} parent=1 // loop_pre_header
      _
    $region3: #{tpu_custom_call.1} parent=1 // loop_header
      %s23 = sphi 0, %s27
      %p24 = scmp.ge.s32.totalorder %s23, 4
      %s30 = sphi 0, %s49
      %s31 = sphi 0, %s45
      %s32 = sphi 0, %s41
      %s33 = sphi 0, %s30
      %s34 = sphi 0, %s31
      %s35 = sphi 0, %s32
      %s36 = sphi 0, %s33
      %s37 = sphi 0, %s34
      %s38 = sphi 0, %s35
      %s56 = sphi 0, %s58
      %s59 = sphi 0, %s56
      %s60 = sphi 0, %s59
      %s76 = sphi 0, %s60
      %s82 = sphi 0, %s84
      %s85 = sphi 0, %s82
      %s86 = sphi 0, %s85
      %s102 = sphi 0, %s86
      %s106 = sphi 0, %s106
      %s108 = sphi 0, %s106
      %s109 = sphi 0, %s108
      %s123 = sphi 0, %s109
      %s127 = sphi 0, %s127
      %s129 = sphi 0, %s127
      %s130 = sphi 0, %s129
      %s144 = sphi 0, %s130
      %s148 = sphi 0, %s148
      %s150 = sphi 0, %s148
      %s151 = sphi 0, %s150
      %s165 = sphi 0, %s151
      %s171 = sphi 0, %s173
      %s174 = sphi 0, %s171
      %s175 = sphi 0, %s174
      %s191 = sphi 0, %s175
      %s197 = sphi 0, %s199
      %s200 = sphi 0, %s197
      %s201 = sphi 0, %s200
      %s217 = sphi 0, %s201
      %s225 = sphi 0, %s227
      %s228 = sphi 0, %s225
      %s229 = sphi 0, %s228
      %s245 = sphi 0, %s229
      %s253 = sphi 0, %s255
      %s256 = sphi 0, %s253
      %s257 = sphi 0, %s256
      %s273 = sphi 0, %s257
      %s281 = sphi 0, %s283
      %s284 = sphi 0, %s281
      %s285 = sphi 0, %s284
      %s301 = sphi 0, %s285
    $region4: #{tpu_custom_call.1} parent=1 // loop_header_branch
      %26 = sbr.rel (%p24) target = $region8
    $region5: #{tpu_custom_call.1} parent=1 // loop_body
      %s28 = ssub.s32 %s23, 1
      %s29 = ssub.s32 %s23, 2
      %s39 = sadd.s32 1, %s32
      %p40 = scmp.ge.s32.totalorder %s39, 1
      %s41 = scalar_select %p40, 0, %s39
      %s42 = sadd.s32 1, %s31
      %s43 = scalar_select %p40, %s42, %s31
      %p44 = scmp.ge.s32.totalorder %s43, 1
      %s45 = scalar_select %p44, 0, %s43
      %s46 = sadd.s32 1, %s30
      %s47 = scalar_select %p44, %s46, %s30
      %p48 = scmp.ge.s32.totalorder %s47, 2
      %s49 = scalar_select %p48, 0, %s47
      %s50 = ssub.s32 %s30, %s49
      %s51 = ssub.s32 %s31, %s45
      %s52 = sor.u32 %s50, %s51
      %s53 = ssub.s32 %s32, %s41
      %s54 = sor.u32 %s52, %s53
      %p55 = scmp.eq.s32.totalorder %s54, 0
      %s57 = sadd.s32 %s56, 1
      %s58 = scalar_select %p55, %s56, %s57
      %p61 = pneg %p55
      %p62 = scmp.eq.s32.totalorder %s23, 1
      %p63 = por %p61, %p62
      %p64 = scmp.ne.s32.totalorder %s56, %s59
      %p65 = scmp.eq.s32.totalorder %s23, 0
      %p66 = por %p64, %p65
      %p67 = scmp.ne.s32.totalorder %s56, %s59
      %p68 = scmp.eq.s32.totalorder %s28, 1
      %p69 = por %p67, %p68
      %p70 = scmp.ne.s32.totalorder %s59, %s60
      %p71 = scmp.eq.s32.totalorder %s28, 0
      %p72 = por %p70, %p71
      %p73 = scmp.ne.s32.totalorder %s59, %s60
      %p74 = scmp.eq.s32.totalorder %s29, 1
      %p75 = por %p73, %p74
      %p77 = scmp.ne.s32.totalorder %s60, %s76
      %p78 = scmp.eq.s32.totalorder %s29, 0
      %p79 = por %p77, %p78
      %s80 = ssub.s32 %s32, %s41
      %p81 = scmp.eq.s32.totalorder %s80, 0
      %s83 = sadd.s32 %s82, 1
      %s84 = scalar_select %p81, %s82, %s83
      %p87 = pneg %p81
      %p88 = scmp.eq.s32.totalorder %s23, 1
      %p89 = por %p87, %p88
      %p90 = scmp.ne.s32.totalorder %s82, %s85
      %p91 = scmp.eq.s32.totalorder %s23, 0
      %p92 = por %p90, %p91
      %p93 = scmp.ne.s32.totalorder %s82, %s85
      %p94 = scmp.eq.s32.totalorder %s28, 1
      %p95 = por %p93, %p94
      %p96 = scmp.ne.s32.totalorder %s85, %s86
      %p97 = scmp.eq.s32.totalorder %s28, 0
      %p98 = por %p96, %p97
      %p99 = scmp.ne.s32.totalorder %s85, %s86
      %p100 = scmp.eq.s32.totalorder %s29, 1
      %p101 = por %p99, %p100
      %p103 = scmp.ne.s32.totalorder %s86, %s102
      %p104 = scmp.eq.s32.totalorder %s29, 0
      %p105 = por %p103, %p104
      %s107 = sadd.s32 %s106, 1
      %p110 = scmp.eq.s32.totalorder %s23, 1
      %p111 = scmp.ne.s32.totalorder %s106, %s108
      %p112 = scmp.eq.s32.totalorder %s23, 0
      %p113 = por %p111, %p112
      %p114 = scmp.ne.s32.totalorder %s106, %s108
      %p115 = scmp.eq.s32.totalorder %s28, 1
      %p116 = por %p114, %p115
      %p117 = scmp.ne.s32.totalorder %s108, %s109
      %p118 = scmp.eq.s32.totalorder %s28, 0
      %p119 = por %p117, %p118
      %p120 = scmp.ne.s32.totalorder %s108, %s109
      %p121 = scmp.eq.s32.totalorder %s29, 1
      %p122 = por %p120, %p121
      %p124 = scmp.ne.s32.totalorder %s109, %s123
      %p125 = scmp.eq.s32.totalorder %s29, 0
      %p126 = por %p124, %p125
      %s128 = sadd.s32 %s127, 1
      %p131 = scmp.eq.s32.totalorder %s23, 1
      %p132 = scmp.ne.s32.totalorder %s127, %s129
      %p133 = scmp.eq.s32.totalorder %s23, 0
      %p134 = por %p132, %p133
      %p135 = scmp.ne.s32.totalorder %s127, %s129
      %p136 = scmp.eq.s32.totalorder %s28, 1
      %p137 = por %p135, %p136
      %p138 = scmp.ne.s32.totalorder %s129, %s130
      %p139 = scmp.eq.s32.totalorder %s28, 0
      %p140 = por %p138, %p139
      %p141 = scmp.ne.s32.totalorder %s129, %s130
      %p142 = scmp.eq.s32.totalorder %s29, 1
      %p143 = por %p141, %p142
      %p145 = scmp.ne.s32.totalorder %s130, %s144
      %p146 = scmp.eq.s32.totalorder %s29, 0
      %p147 = por %p145, %p146
      %s149 = sadd.s32 %s148, 1
      %p152 = scmp.eq.s32.totalorder %s23, 1
      %p153 = scmp.ne.s32.totalorder %s148, %s150
      %p154 = scmp.eq.s32.totalorder %s23, 0
      %p155 = por %p153, %p154
      %p156 = scmp.ne.s32.totalorder %s148, %s150
      %p157 = scmp.eq.s32.totalorder %s28, 1
      %p158 = por %p156, %p157
      %p159 = scmp.ne.s32.totalorder %s150, %s151
      %p160 = scmp.eq.s32.totalorder %s28, 0
      %p161 = por %p159, %p160
      %p162 = scmp.ne.s32.totalorder %s150, %s151
      %p163 = scmp.eq.s32.totalorder %s29, 1
      %p164 = por %p162, %p163
      %p166 = scmp.ne.s32.totalorder %s151, %s165
      %p167 = scmp.eq.s32.totalorder %s29, 0
      %p168 = por %p166, %p167
      %s169 = ssub.s32 %s31, %s45
      %p170 = scmp.eq.s32.totalorder %s169, 0
      %s172 = sadd.s32 %s171, 1
      %s173 = scalar_select %p170, %s171, %s172
      %p176 = pneg %p170
      %p177 = scmp.eq.s32.totalorder %s23, 1
      %p178 = por %p176, %p177
      %p179 = scmp.ne.s32.totalorder %s171, %s174
      %p180 = scmp.eq.s32.totalorder %s23, 0
      %p181 = por %p179, %p180
      %p182 = scmp.ne.s32.totalorder %s171, %s174
      %p183 = scmp.eq.s32.totalorder %s28, 1
      %p184 = por %p182, %p183
      %p185 = scmp.ne.s32.totalorder %s174, %s175
      %p186 = scmp.eq.s32.totalorder %s28, 0
      %p187 = por %p185, %p186
      %p188 = scmp.ne.s32.totalorder %s174, %s175
      %p189 = scmp.eq.s32.totalorder %s29, 1
      %p190 = por %p188, %p189
      %p192 = scmp.ne.s32.totalorder %s175, %s191
      %p193 = scmp.eq.s32.totalorder %s29, 0
      %p194 = por %p192, %p193
      %s195 = ssub.s32 %s31, %s45
      %p196 = scmp.eq.s32.totalorder %s195, 0
      %s198 = sadd.s32 %s197, 1
      %s199 = scalar_select %p196, %s197, %s198
      %p202 = pneg %p196
      %p203 = scmp.eq.s32.totalorder %s23, 1
      %p204 = por %p202, %p203
      %p205 = scmp.ne.s32.totalorder %s197, %s200
      %p206 = scmp.eq.s32.totalorder %s23, 0
      %p207 = por %p205, %p206
      %p208 = scmp.ne.s32.totalorder %s197, %s200
      %p209 = scmp.eq.s32.totalorder %s28, 1
      %p210 = por %p208, %p209
      %p211 = scmp.ne.s32.totalorder %s200, %s201
      %p212 = scmp.eq.s32.totalorder %s28, 0
      %p213 = por %p211, %p212
      %p214 = scmp.ne.s32.totalorder %s200, %s201
      %p215 = scmp.eq.s32.totalorder %s29, 1
      %p216 = por %p214, %p215
      %p218 = scmp.ne.s32.totalorder %s201, %s217
      %p219 = scmp.eq.s32.totalorder %s29, 0
      %p220 = por %p218, %p219
      %s221 = ssub.s32 %s30, %s49
      %s222 = ssub.s32 %s31, %s45
      %s223 = sor.u32 %s221, %s222
      %p224 = scmp.eq.s32.totalorder %s223, 0
      %s226 = sadd.s32 %s225, 1
      %s227 = scalar_select %p224, %s225, %s226
      %p230 = pneg %p224
      %p231 = scmp.eq.s32.totalorder %s23, 1
      %p232 = por %p230, %p231
      %p233 = scmp.ne.s32.totalorder %s225, %s228
      %p234 = scmp.eq.s32.totalorder %s23, 0
      %p235 = por %p233, %p234
      %p236 = scmp.ne.s32.totalorder %s225, %s228
      %p237 = scmp.eq.s32.totalorder %s28, 1
      %p238 = por %p236, %p237
      %p239 = scmp.ne.s32.totalorder %s228, %s229
      %p240 = scmp.eq.s32.totalorder %s28, 0
      %p241 = por %p239, %p240
      %p242 = scmp.ne.s32.totalorder %s228, %s229
      %p243 = scmp.eq.s32.totalorder %s29, 1
      %p244 = por %p242, %p243
      %p246 = scmp.ne.s32.totalorder %s229, %s245
      %p247 = scmp.eq.s32.totalorder %s29, 0
      %p248 = por %p246, %p247
      %s249 = ssub.s32 %s30, %s49
      %s250 = ssub.s32 %s31, %s45
      %s251 = sor.u32 %s249, %s250
      %p252 = scmp.eq.s32.totalorder %s251, 0
      %s254 = sadd.s32 %s253, 1
      %s255 = scalar_select %p252, %s253, %s254
      %p258 = pneg %p252
      %p259 = scmp.eq.s32.totalorder %s23, 1
      %p260 = por %p258, %p259
      %p261 = scmp.ne.s32.totalorder %s253, %s256
      %p262 = scmp.eq.s32.totalorder %s23, 0
      %p263 = por %p261, %p262
      %p264 = scmp.ne.s32.totalorder %s253, %s256
      %p265 = scmp.eq.s32.totalorder %s28, 1
      %p266 = por %p264, %p265
      %p267 = scmp.ne.s32.totalorder %s256, %s257
      %p268 = scmp.eq.s32.totalorder %s28, 0
      %p269 = por %p267, %p268
      %p270 = scmp.ne.s32.totalorder %s256, %s257
      %p271 = scmp.eq.s32.totalorder %s29, 1
      %p272 = por %p270, %p271
      %p274 = scmp.ne.s32.totalorder %s257, %s273
      %p275 = scmp.eq.s32.totalorder %s29, 0
      %p276 = por %p274, %p275
      %s277 = ssub.s32 %s30, %s49
      %s278 = ssub.s32 %s31, %s45
      %s279 = sor.u32 %s277, %s278
      %p280 = scmp.eq.s32.totalorder %s279, 0
      %s282 = sadd.s32 %s281, 1
      %s283 = scalar_select %p280, %s281, %s282
      %p286 = pneg %p280
      %p287 = scmp.eq.s32.totalorder %s23, 1
      %p288 = por %p286, %p287
      %p289 = scmp.ne.s32.totalorder %s281, %s284
      %p290 = scmp.eq.s32.totalorder %s23, 0
      %p291 = por %p289, %p290
      %p292 = scmp.ne.s32.totalorder %s281, %s284
      %p293 = scmp.eq.s32.totalorder %s28, 1
      %p294 = por %p292, %p293
      %p295 = scmp.ne.s32.totalorder %s284, %s285
      %p296 = scmp.eq.s32.totalorder %s28, 0
      %p297 = por %p295, %p296
      %p298 = scmp.ne.s32.totalorder %s284, %s285
      %p299 = scmp.eq.s32.totalorder %s29, 1
      %p300 = por %p298, %p299
      %p302 = scmp.ne.s32.totalorder %s285, %s301
      %p303 = scmp.eq.s32.totalorder %s29, 0
      %p304 = por %p302, %p303
      %p305 = scmp.le.s32.totalorder 1, %s23
      %p306 = scmp.lt.s32.totalorder %s23, 3
      %p307 = pnand %p305, %p306
      %p308 = pneg %p307
      // Predicated region
      $region9: #{tpu_custom_call.1} parent=5 // pred_check
        _
      $region10: #{tpu_custom_call.1} parent=5 // pred_check_branch
        %310 = sbr.rel (%p307) target = $region12
      $region11: #{tpu_custom_call.1} parent=5 // pred_region
        %s311 = ssub.s32 %s23, 1
        // Predicated region
        $region13: #{tpu_custom_call.1} parent=11 // pred_check
          %p312 = pneg %p98
        $region14: #{tpu_custom_call.1} parent=11 // pred_check_branch
          %314 = sbr.rel (%p312) target = $region16
        $region15: #{tpu_custom_call.1} parent=11 // pred_region
          %s315 = smul.u32 16, %s35
          %s317 = ssub.s32 6144, 6144
          %318 = vsyncadd [#allocation4], %s317
          %s319 = smul.addr %s315, 3
          %s320 = smul.addr %s319, 128
          %s321 = scalar_lea.hbm %s1, %s320
          %s322 = sshll.u32 [#allocation3], 4
          %s323 = int_to_ptr.vmem [resolvable:$true] %s322
          %328 = dma.hbm_to_vmem [thread:$0]  %s321, 6144, %s323, [#allocation4], 384, 384, 24
        $region16: #{tpu_custom_call.1} parent=11 // pred_fallthru
          _
        // Predicated region
        $region17: #{tpu_custom_call.1} parent=11 // pred_check
          %p329 = pneg %p119
        $region18: #{tpu_custom_call.1} parent=11 // pred_check_branch
          %331 = sbr.rel (%p329) target = $region20
        $region19: #{tpu_custom_call.1} parent=11 // pred_region
          _
        $region20: #{tpu_custom_call.1} parent=11 // pred_fallthru
          _
        // Predicated region
        $region21: #{tpu_custom_call.1} parent=11 // pred_check
          %p332 = pneg %p140
        $region22: #{tpu_custom_call.1} parent=11 // pred_check_branch
          %334 = sbr.rel (%p332) target = $region24
        $region23: #{tpu_custom_call.1} parent=11 // pred_region
          _
        $region24: #{tpu_custom_call.1} parent=11 // pred_fallthru
          _
        // Predicated region
        $region25: #{tpu_custom_call.1} parent=11 // pred_check
          %p335 = pneg %p161
        $region26: #{tpu_custom_call.1} parent=11 // pred_check_branch
          %337 = sbr.rel (%p335) target = $region28
        $region27: #{tpu_custom_call.1} parent=11 // pred_region
          _
        $region28: #{tpu_custom_call.1} parent=11 // pred_fallthru
          _
        // Predicated region
        $region29: #{tpu_custom_call.1} parent=11 // pred_check
          %p338 = pneg %p187
        $region30: #{tpu_custom_call.1} parent=11 // pred_check_branch
          %340 = sbr.rel (%p338) target = $region32
        $region31: #{tpu_custom_call.1} parent=11 // pred_region
          %s341 = smul.u32 8, %s34
          %p342 = scmp.lt.s32.totalorder %s341, 7
          %s343 = scalar_select %p342, %s341, 7
          %s344 = smul.addr %s343, 8
          %s345 = scalar_lea.vmem %s5, %s344
          %s346 = smul.u32 8, %s34
        $region32: #{tpu_custom_call.1} parent=11 // pred_fallthru
          _
        // Predicated region
        $region33: #{tpu_custom_call.1} parent=11 // pred_check
          %p347 = pneg %p213
        $region34: #{tpu_custom_call.1} parent=11 // pred_check_branch
          %349 = sbr.rel (%p347) target = $region36
        $region35: #{tpu_custom_call.1} parent=11 // pred_region
          %s350 = smul.u32 8, %s34
          %p351 = scmp.lt.s32.totalorder %s350, 7
          %s352 = scalar_select %p351, %s350, 7
          %s353 = smul.addr %s352, 8
          %s354 = scalar_lea.vmem %s6, %s353
          %s355 = smul.u32 8, %s34
        $region36: #{tpu_custom_call.1} parent=11 // pred_fallthru
          _
      $region12: #{tpu_custom_call.1} parent=5 // pred_fallthru
        _
      %p356 = scmp.lt.s32.totalorder %s23, 2
      // Predicated region
      $region37: #{tpu_custom_call.1} parent=5 // pred_check
        %p357 = pneg %p356
      $region38: #{tpu_custom_call.1} parent=5 // pred_check_branch
        %359 = sbr.rel (%p357) target = $region40
      $region39: #{tpu_custom_call.1} parent=5 // pred_region
        // Predicated region
        $region41: #{tpu_custom_call.1} parent=39 // pred_check
          %p360 = pneg %p66
        $region42: #{tpu_custom_call.1} parent=39 // pred_check_branch
          %362 = sbr.rel (%p360) target = $region44
        $region43: #{tpu_custom_call.1} parent=39 // pred_region
          %s363 = smul.u32 8, %s31
          %p364 = scmp.lt.s32.totalorder %s30, 1
          %s365 = scalar_select %p364, %s30, 1
          %p366 = scmp.lt.s32.totalorder %s363, 7
          %s367 = scalar_select %p366, %s363, 7
          %p368 = scmp.lt.s32.totalorder %s32, 0
          %s369 = scalar_select %p368, %s32, 0
          %s370 = sadd.s32 %s369, %s367
          %s371 = smul.addr %s365, 8
          %s372 = sadd.s32 %s370, %s371
          %s373 = smul.addr %s372, 8
          %s374 = scalar_lea.vmem %s0, %s373
          %s375 = smul.u32 8, %s31
        $region44: #{tpu_custom_call.1} parent=39 // pred_fallthru
          _
      $region40: #{tpu_custom_call.1} parent=5 // pred_fallthru
        _
      %p376 = scmp.le.s32.totalorder 1, %s23
      %p377 = scmp.lt.s32.totalorder %s23, 3
      %p378 = pnand %p376, %p377
      %p379 = pneg %p378
      // Predicated region
      $region45: #{tpu_custom_call.1} parent=5 // pred_check
        _
      $region46: #{tpu_custom_call.1} parent=5 // pred_check_branch
        %381 = sbr.rel (%p378) target = $region48
      $region47: #{tpu_custom_call.1} parent=5 // pred_region
        %s382 = ssub.s32 %s23, 1
        // Predicated region
        $region49: #{tpu_custom_call.1} parent=47 // pred_check
          %p383 = pneg %p98
        $region50: #{tpu_custom_call.1} parent=47 // pred_check_branch
          %385 = sbr.rel (%p383) target = $region52
        $region51: #{tpu_custom_call.1} parent=47 // pred_region
          %386 = dma.done [#allocation4], 6144
        $region52: #{tpu_custom_call.1} parent=47 // pred_fallthru
          _
        %s387 = smul.u32 8, %s34
        %p388 = scmp.lt.s32.totalorder %s33, 1
        %s389 = scalar_select %p388, %s33, 1
        %p390 = scmp.lt.s32.totalorder %s387, 7
        %s391 = scalar_select %p390, %s387, 7
        %p392 = scmp.lt.s32.totalorder %s35, 0
        %s393 = scalar_select %p392, %s35, 0
        %s394 = sadd.s32 %s393, %s391
        %s395 = smul.addr %s389, 8
        %s396 = sadd.s32 %s394, %s395
        %s397 = smul.addr %s396, 8
        %s398 = scalar_lea.vmem %s0, %s397
        %p399 = pneg %p72
        %p400 = pneg %p69
        %p401 = pneg %p98
        %p402 = pneg %p95
        %p403 = pneg %p119
        %p404 = pneg %p116
        %p405 = pneg %p140
        %p406 = pneg %p137
        %p407 = pneg %p161
        %p408 = pneg %p158
        %s409 = smul.u32 8, %s34
        %p410 = scmp.lt.s32.totalorder %s409, 7
        %s411 = scalar_select %p410, %s409, 7
        %s412 = smul.addr %s411, 8
        %s413 = scalar_lea.vmem %s5, %s412
        %p414 = pneg %p187
        %p415 = pneg %p184
        %s416 = smul.u32 8, %s34
        %p417 = scmp.lt.s32.totalorder %s416, 7
        %s418 = scalar_select %p417, %s416, 7
        %s419 = smul.addr %s418, 8
        %s420 = scalar_lea.vmem %s6, %s419
        %p421 = pneg %p213
        %p422 = pneg %p210
        %p423 = pneg %p241
        %p424 = pneg %p238
        %s425 = sand.u32 %s228, 1
        %s426 = scalar_lea.sflag [#allocation5], %s425
        %s427 = sand.u32 %s228, 1
        %s428 = smul.addr %s427, 64
        %s429 = scalar_lea.vmem [#allocation6], %s428
        %p430 = pneg %p269
        %p431 = pneg %p266
        %s432 = sand.u32 %s28, 1
        %s433 = scalar_lea.sflag [#allocation8], %s432
        %s434 = sand.u32 %s256, 1
        %s435 = smul.addr %s434, 64
        %s436 = scalar_lea.vmem [#allocation7], %s435
        %p437 = pneg %p297
        %p438 = pneg %p294
        %s439 = sand.u32 %s28, 1
        %s440 = scalar_lea.sflag [#allocation8], %s439
        %s441 = sand.u32 %s284, 1
        %s442 = smul.addr %s441, 64
        %s443 = scalar_lea.vmem [#allocation9], %s442
        %s444 = smul.u32 8, %s34
        %p445 = scmp.lt.s32.totalorder %s33, 1
        %s446 = scalar_select %p445, %s33, 1
        %p447 = scmp.lt.s32.totalorder %s444, 7
        %s448 = scalar_select %p447, %s444, 7
        %p449 = scmp.lt.s32.totalorder %s35, 0
        %s450 = scalar_select %p449, %s35, 0
        %s451 = sadd.s32 %s450, %s448
        %s452 = smul.addr %s446, 8
        %s453 = sadd.s32 %s451, %s452
        %s454 = smul.addr %s453, 8
        %s455 = scalar_lea.vmem %s0, %s454
        %s456 = smul.u32 8, %s34
        %s457 = smul.u32 16, %s35
        %s458 = smul.u32 8, %s34
        %p459 = scmp.lt.s32.totalorder %s458, 7
        %s460 = scalar_select %p459, %s458, 7
        %s461 = smul.addr %s460, 8
        %s462 = scalar_lea.vmem %s5, %s461
        %s463 = smul.u32 8, %s34
        %s464 = smul.u32 8, %s34
        %p465 = scmp.lt.s32.totalorder %s464, 7
        %s466 = scalar_select %p465, %s464, 7
        %s467 = smul.addr %s466, 8
        %s468 = scalar_lea.vmem %s6, %s467
        %s469 = smul.u32 8, %s34
        %s470 = smul.u32 8, %s34
        %s471 = smul.u32 8, %s34
        %s472 = smul.u32 8, %s34
        %p473 = scmp.eq.s32.totalorder %s35, 0
        // Predicated region
        $region53: #{tpu_custom_call.1} parent=47 // pred_check
          %p474 = pneg %p473
        $region54: #{tpu_custom_call.1} parent=47 // pred_check_branch
          %476 = sbr.rel (%p474) target = $region56
        $region55: #{tpu_custom_call.1} parent=47 // pred_region
          %477 = vst [vmem:[#allocation2] sm:$0xff] 0.0
          %478 = vst [vmem:[#allocation2 + $0x8] sm:$0xff] 0.0
          %479 = vst [vmem:[#allocation2 + $0x10] sm:$0xff] 0.0
          %480 = vst [vmem:[#allocation2 + $0x18] sm:$0xff] 0.0
          %481 = vst [vmem:[#allocation2 + $0x20] sm:$0xff] 0.0
          %482 = vst [vmem:[#allocation2 + $0x28] sm:$0xff] 0.0
          %483 = vst [vmem:[#allocation2 + $0x30] sm:$0xff] 0.0
          %484 = vst [vmem:[#allocation2 + $0x38] sm:$0xff] 0.0
          %485 = vst [vmem:[#allocation2 + $0x40] sm:$0xff] 0.0
          %486 = vst [vmem:[#allocation2 + $0x48] sm:$0xff] 0.0
          %487 = vst [vmem:[#allocation2 + $0x50] sm:$0xff] 0.0
          %488 = vst [vmem:[#allocation2 + $0x58] sm:$0xff] 0.0
          %489 = vst [vmem:[#allocation2 + $0x60] sm:$0xff] 0.0
          %490 = vst [vmem:[#allocation2 + $0x68] sm:$0xff] 0.0
          %491 = vst [vmem:[#allocation2 + $0x70] sm:$0xff] 0.0
          %492 = vst [vmem:[#allocation2 + $0x78] sm:$0xff] 0.0
          %493 = vst [vmem:[#allocation2 + $0x80] sm:$0xff] 0.0
          %494 = vst [vmem:[#allocation2 + $0x88] sm:$0xff] 0.0
          %495 = vst [vmem:[#allocation2 + $0x90] sm:$0xff] 0.0
          %496 = vst [vmem:[#allocation2 + $0x98] sm:$0xff] 0.0
          %497 = vst [vmem:[#allocation2 + $0xa0] sm:$0xff] 0.0
          %498 = vst [vmem:[#allocation2 + $0xa8] sm:$0xff] 0.0
          %499 = vst [vmem:[#allocation2 + $0xb0] sm:$0xff] 0.0
          %500 = vst [vmem:[#allocation2 + $0xb8] sm:$0xff] 0.0
        $region56: #{tpu_custom_call.1} parent=47 // pred_fallthru
          _
        %v501 = vld [vmem:[#allocation2] sm:$0xff]
        %v502 = vld [vmem:[#allocation2 + $0x8] sm:$0xff]
        %v503 = vld [vmem:[#allocation2 + $0x10] sm:$0xff]
        %v504 = vld [vmem:[#allocation2 + $0x18] sm:$0xff]
        %v505 = vld [vmem:[#allocation2 + $0x20] sm:$0xff]
        %v506 = vld [vmem:[#allocation2 + $0x28] sm:$0xff]
        %v507 = vld [vmem:[#allocation2 + $0x30] sm:$0xff]
        %v508 = vld [vmem:[#allocation2 + $0x38] sm:$0xff]
        %v509 = vld [vmem:[#allocation2 + $0x40] sm:$0xff]
        %v510 = vld [vmem:[#allocation2 + $0x48] sm:$0xff]
        %v511 = vld [vmem:[#allocation2 + $0x50] sm:$0xff]
        %v512 = vld [vmem:[#allocation2 + $0x58] sm:$0xff]
        %v513 = vld [vmem:[#allocation2 + $0x60] sm:$0xff]
        %v514 = vld [vmem:[#allocation2 + $0x68] sm:$0xff]
        %v515 = vld [vmem:[#allocation2 + $0x70] sm:$0xff]
        %v516 = vld [vmem:[#allocation2 + $0x78] sm:$0xff]
        %v517 = vld [vmem:[#allocation2 + $0x80] sm:$0xff]
        %v518 = vld [vmem:[#allocation2 + $0x88] sm:$0xff]
        %v519 = vld [vmem:[#allocation2 + $0x90] sm:$0xff]
        %v520 = vld [vmem:[#allocation2 + $0x98] sm:$0xff]
        %v521 = vld [vmem:[#allocation2 + $0xa0] sm:$0xff]
        %v522 = vld [vmem:[#allocation2 + $0xa8] sm:$0xff]
        %v523 = vld [vmem:[#allocation2 + $0xb0] sm:$0xff]
        %v524 = vld [vmem:[#allocation2 + $0xb8] sm:$0xff]
        %v525 = vld [vmem:[%s455] sm:$0xff]
        %v526 = vld [vmem:[%s455 + $0x8] sm:$0xff]
        %v527 = vld [vmem:[%s455 + $0x10] sm:$0xff]
        %v528 = vld [vmem:[%s455 + $0x18] sm:$0xff]
        %v529 = vld [vmem:[%s455 + $0x20] sm:$0xff]
        %v530 = vld [vmem:[%s455 + $0x28] sm:$0xff]
        %v531 = vld [vmem:[%s455 + $0x30] sm:$0xff]
        %v532 = vld [vmem:[%s455 + $0x38] sm:$0xff]
        %v533 = vld [vmem:[#allocation3] sm:$0xff]
        %v534 = vld [vmem:[#allocation3 + $0x8] sm:$0xff]
        %v535 = vld [vmem:[#allocation3 + $0x10] sm:$0xff]
        %v536 = vld [vmem:[#allocation3 + $0x18] sm:$0xff]
        %v537 = vld [vmem:[#allocation3 + $0x20] sm:$0xff]
        %v538 = vld [vmem:[#allocation3 + $0x28] sm:$0xff]
        %v539 = vld [vmem:[#allocation3 + $0x30] sm:$0xff]
        %v540 = vld [vmem:[#allocation3 + $0x38] sm:$0xff]
        %v541 = vld [vmem:[#allocation3 + $0x40] sm:$0xff]
        %v542 = vld [vmem:[#allocation3 + $0x48] sm:$0xff]
        %v543 = vld [vmem:[#allocation3 + $0x50] sm:$0xff]
        %v544 = vld [vmem:[#allocation3 + $0x58] sm:$0xff]
        %v545 = vld [vmem:[#allocation3 + $0x60] sm:$0xff]
        %v546 = vld [vmem:[#allocation3 + $0x68] sm:$0xff]
        %v547 = vld [vmem:[#allocation3 + $0x70] sm:$0xff]
        %v548 = vld [vmem:[#allocation3 + $0x78] sm:$0xff]
        %v549 = vld [vmem:[#allocation3 + $0x80] sm:$0xff]
        %v550 = vld [vmem:[#allocation3 + $0x88] sm:$0xff]
        %v551 = vld [vmem:[#allocation3 + $0x90] sm:$0xff]
        %v552 = vld [vmem:[#allocation3 + $0x98] sm:$0xff]
        %v553 = vld [vmem:[#allocation3 + $0xa0] sm:$0xff]
        %v554 = vld [vmem:[#allocation3 + $0xa8] sm:$0xff]
        %v555 = vld [vmem:[#allocation3 + $0xb0] sm:$0xff]
        %v556 = vld [vmem:[#allocation3 + $0xb8] sm:$0xff]
        %v557 = vld [vmem:[#allocation3 + $0xc0] sm:$0xff]
        %v558 = vld [vmem:[#allocation3 + $0xc8] sm:$0xff]
        %v559 = vld [vmem:[#allocation3 + $0xd0] sm:$0xff]
        %v560 = vld [vmem:[#allocation3 + $0xd8] sm:$0xff]
        %v561 = vld [vmem:[#allocation3 + $0xe0] sm:$0xff]
        %v562 = vld [vmem:[#allocation3 + $0xe8] sm:$0xff]
        %v563 = vld [vmem:[#allocation3 + $0xf0] sm:$0xff]
        %v564 = vld [vmem:[#allocation3 + $0xf8] sm:$0xff]
        %v565 = vld [vmem:[#allocation3 + $0x100] sm:$0xff]
        %v566 = vld [vmem:[#allocation3 + $0x108] sm:$0xff]
        %v567 = vld [vmem:[#allocation3 + $0x110] sm:$0xff]
        %v568 = vld [vmem:[#allocation3 + $0x118] sm:$0xff]
        %v569 = vld [vmem:[#allocation3 + $0x120] sm:$0xff]
        %v570 = vld [vmem:[#allocation3 + $0x128] sm:$0xff]
        %v571 = vld [vmem:[#allocation3 + $0x130] sm:$0xff]
        %v572 = vld [vmem:[#allocation3 + $0x138] sm:$0xff]
        %v573 = vld [vmem:[#allocation3 + $0x140] sm:$0xff]
        %v574 = vld [vmem:[#allocation3 + $0x148] sm:$0xff]
        %v575 = vld [vmem:[#allocation3 + $0x150] sm:$0xff]
        %v576 = vld [vmem:[#allocation3 + $0x158] sm:$0xff]
        %v577 = vld [vmem:[#allocation3 + $0x160] sm:$0xff]
        %v578 = vld [vmem:[#allocation3 + $0x168] sm:$0xff]
        %v579 = vld [vmem:[#allocation3 + $0x170] sm:$0xff]
        %v580 = vld [vmem:[#allocation3 + $0x178] sm:$0xff]
        %581 = vmatprep.subr.mxu0 %v579
        %582 = vmatpush1.msra.mxu0 %v578
        %583 = vmatprep.subr.mxu0 %v576
        %584 = vmatpush1.msra.mxu0 %v575
        %585 = vmatprep.subr.mxu0 %v573
        %586 = vmatpush1.msra.mxu0 %v572
        %587 = vmatprep.subr.mxu0 %v570
        %588 = vmatpush1.msra.mxu0 %v569
        %589 = vmatprep.subr.mxu0 %v567
        %590 = vmatpush1.msra.mxu0 %v566
        %591 = vmatprep.subr.mxu0 %v564
        %592 = vmatpush1.msra.mxu0 %v563
        %593 = vmatprep.subr.mxu0 %v561
        %594 = vmatpush1.msra.mxu0 %v560
        %595 = vmatprep.subr.mxu0 %v558
        %596 = vmatpush1.msra.mxu0 %v557
        %597 = vmatprep.subr.mxu0 %v555
        %598 = vmatpush1.msra.mxu0 %v554
        %599 = vmatprep.subr.mxu0 %v552
        %600 = vmatpush1.msra.mxu0 %v551
        %601 = vmatprep.subr.mxu0 %v549
        %602 = vmatpush1.msra.mxu0 %v548
        %603 = vmatprep.subr.mxu0 %v546
        %604 = vmatpush1.msra.mxu0 %v545
        %605 = vmatprep.subr.mxu0 %v543
        %606 = vmatpush1.msra.mxu0 %v542
        %607 = vmatprep.subr.mxu0 %v540
        %608 = vmatpush1.msra.mxu0 %v539
        %609 = vmatprep.subr.mxu0 %v537
        %610 = vmatpush1.msra.mxu0 %v536
        %611 = vmatprep.subr.mxu0 %v534
        %612 = vmatpush1.msra.mxu0 %v533
        %613 = vmatprep.subr.mxu0 0.0
        %614 = vmatpush2.msra.mxu0 0.0
        %615 = vmatprep.subr.mxu0 0.0
        %616 = vmatpush2.msra.mxu0 0.0
        %617 = vmatprep.subr.mxu0 0.0
        %618 = vmatpush2.msra.mxu0 0.0
        %619 = vmatprep.subr.mxu0 0.0
        %620 = vmatpush2.msra.mxu0 0.0
        %621 = vmatprep.subr.mxu0 0.0
        %622 = vmatpush2.msra.mxu0 0.0
        %623 = vmatprep.subr.mxu0 0.0
        %624 = vmatpush2.msra.mxu0 0.0
        %625 = vmatprep.subr.mxu0 0.0
        %626 = vmatpush2.msra.mxu0 0.0
        %627 = vmatprep.subr.mxu0 0.0
        %628 = vmatpush2.msra.mxu0 0.0
        %629 = vmatprep.subr.mxu0 0.0
        %630 = vmatpush2.msra.mxu0 0.0
        %631 = vmatprep.subr.mxu0 0.0
        %632 = vmatpush2.msra.mxu0 0.0
        %633 = vmatprep.subr.mxu0 0.0
        %634 = vmatpush2.msra.mxu0 0.0
        %635 = vmatprep.subr.mxu0 0.0
        %636 = vmatpush2.msra.mxu0 0.0
        %637 = vmatprep.subr.mxu0 0.0
        %638 = vmatpush2.msra.mxu0 0.0
        %639 = vmatprep.subr.mxu0 0.0
        %640 = vmatpush2.msra.mxu0 0.0
        %641 = vmatprep.subr.mxu0 0.0
        %642 = vmatpush2.msra.mxu0 0.0
        %643 = vmatprep.subr.mxu0 0.0
        %644 = vmatpush2.msra.mxu0 0.0
        %645 = vmatprep.mubr.f32.mxu0 0.0
        %646 = vmatmul.mubr.f32.gmra.mxu0 %v525
        %v647 = vpop.f32.mrf.mxu0
        %v648 = vadd.f32 0.0, %v647
        %v649 = vpop.f32.mrf.mxu0
        %v650 = vadd.f32 0.0, %v649
        %651 = vmatprep.mubr.f32.mxu0 0.0
        %652 = vmatmul.mubr.f32.gmra.mxu0 %v526
        %v653 = vpop.f32.mrf.mxu0
        %v654 = vadd.f32 0.0, %v653
        %v655 = vpop.f32.mrf.mxu0
        %v656 = vadd.f32 0.0, %v655
        %657 = vmatprep.mubr.f32.mxu0 0.0
        %658 = vmatmul.mubr.f32.gmra.mxu0 %v527
        %v659 = vpop.f32.mrf.mxu0
        %v660 = vadd.f32 0.0, %v659
        %v661 = vpop.f32.mrf.mxu0
        %v662 = vadd.f32 0.0, %v661
        %663 = vmatprep.mubr.f32.mxu0 0.0
        %664 = vmatmul.mubr.f32.gmra.mxu0 %v528
        %v665 = vpop.f32.mrf.mxu0
        %v666 = vadd.f32 0.0, %v665
        %v667 = vpop.f32.mrf.mxu0
        %v668 = vadd.f32 0.0, %v667
        %669 = vmatprep.mubr.f32.mxu0 0.0
        %670 = vmatmul.mubr.f32.gmra.mxu0 %v529
        %v671 = vpop.f32.mrf.mxu0
        %v672 = vadd.f32 0.0, %v671
        %v673 = vpop.f32.mrf.mxu0
        %v674 = vadd.f32 0.0, %v673
        %675 = vmatprep.mubr.f32.mxu0 0.0
        %676 = vmatmul.mubr.f32.gmra.mxu0 %v530
        %v677 = vpop.f32.mrf.mxu0
        %v678 = vadd.f32 0.0, %v677
        %v679 = vpop.f32.mrf.mxu0
        %v680 = vadd.f32 0.0, %v679
        %681 = vmatprep.mubr.f32.mxu0 0.0
        %682 = vmatmul.mubr.f32.gmra.mxu0 %v531
        %v683 = vpop.f32.mrf.mxu0
        %v684 = vadd.f32 0.0, %v683
        %v685 = vpop.f32.mrf.mxu0
        %v686 = vadd.f32 0.0, %v685
        %687 = vmatprep.mubr.f32.mxu0 0.0
        %688 = vmatmul.mubr.f32.gmra.mxu0 %v532
        %v689 = vpop.f32.mrf.mxu0
        %v690 = vadd.f32 0.0, %v689
        %v691 = vpop.f32.mrf.mxu0
        %v692 = vadd.f32 0.0, %v691
        %693 = vdwg.mxu0
        %694 = vmatprep.subr.mxu0 0.0
        %695 = vmatpush1.msra.mxu0 %v580
        %696 = vmatprep.subr.mxu0 0.0
        %697 = vmatpush1.msra.mxu0 %v577
        %698 = vmatprep.subr.mxu0 0.0
        %699 = vmatpush1.msra.mxu0 %v574
        %700 = vmatprep.subr.mxu0 0.0
        %701 = vmatpush1.msra.mxu0 %v571
        %702 = vmatprep.subr.mxu0 0.0
        %703 = vmatpush1.msra.mxu0 %v568
        %704 = vmatprep.subr.mxu0 0.0
        %705 = vmatpush1.msra.mxu0 %v565
        %706 = vmatprep.subr.mxu0 0.0
        %707 = vmatpush1.msra.mxu0 %v562
        %708 = vmatprep.subr.mxu0 0.0
        %709 = vmatpush1.msra.mxu0 %v559
        %710 = vmatprep.subr.mxu0 0.0
        %711 = vmatpush1.msra.mxu0 %v556
        %712 = vmatprep.subr.mxu0 0.0
        %713 = vmatpush1.msra.mxu0 %v553
        %714 = vmatprep.subr.mxu0 0.0
        %715 = vmatpush1.msra.mxu0 %v550
        %716 = vmatprep.subr.mxu0 0.0
        %717 = vmatpush1.msra.mxu0 %v547
        %718 = vmatprep.subr.mxu0 0.0
        %719 = vmatpush1.msra.mxu0 %v544
        %720 = vmatprep.subr.mxu0 0.0
        %721 = vmatpush1.msra.mxu0 %v541
        %722 = vmatprep.subr.mxu0 0.0
        %723 = vmatpush1.msra.mxu0 %v538
        %724 = vmatprep.subr.mxu0 0.0
        %725 = vmatpush1.msra.mxu0 %v535
        %726 = vmatprep.subr.mxu0 0.0
        %727 = vmatpush2.msra.mxu0 0.0
        %728 = vmatprep.subr.mxu0 0.0
        %729 = vmatpush2.msra.mxu0 0.0
        %730 = vmatprep.subr.mxu0 0.0
        %731 = vmatpush2.msra.mxu0 0.0
        %732 = vmatprep.subr.mxu0 0.0
        %733 = vmatpush2.msra.mxu0 0.0
        %734 = vmatprep.subr.mxu0 0.0
        %735 = vmatpush2.msra.mxu0 0.0
        %736 = vmatprep.subr.mxu0 0.0
        %737 = vmatpush2.msra.mxu0 0.0
        %738 = vmatprep.subr.mxu0 0.0
        %739 = vmatpush2.msra.mxu0 0.0
        %740 = vmatprep.subr.mxu0 0.0
        %741 = vmatpush2.msra.mxu0 0.0
        %742 = vmatprep.subr.mxu0 0.0
        %743 = vmatpush2.msra.mxu0 0.0
        %744 = vmatprep.subr.mxu0 0.0
        %745 = vmatpush2.msra.mxu0 0.0
        %746 = vmatprep.subr.mxu0 0.0
        %747 = vmatpush2.msra.mxu0 0.0
        %748 = vmatprep.subr.mxu0 0.0
        %749 = vmatpush2.msra.mxu0 0.0
        %750 = vmatprep.subr.mxu0 0.0
        %751 = vmatpush2.msra.mxu0 0.0
        %752 = vmatprep.subr.mxu0 0.0
        %753 = vmatpush2.msra.mxu0 0.0
        %754 = vmatprep.subr.mxu0 0.0
        %755 = vmatpush2.msra.mxu0 0.0
        %756 = vmatprep.subr.mxu0 0.0
        %757 = vmatpush2.msra.mxu0 0.0
        %758 = vmatprep.mubr.f32.mxu0 0.0
        %759 = vmatmul.mubr.f32.gmra.mxu0 %v525
        %v760 = vpop.f32.mrf.mxu0
        %v761 = vadd.f32 0.0, %v760
        %v762 = vpop.f32.mrf.mxu0
        %763 = vmatprep.mubr.f32.mxu0 0.0
        %764 = vmatmul.mubr.f32.gmra.mxu0 %v526
        %v765 = vpop.f32.mrf.mxu0
        %v766 = vadd.f32 0.0, %v765
        %v767 = vpop.f32.mrf.mxu0
        %768 = vmatprep.mubr.f32.mxu0 0.0
        %769 = vmatmul.mubr.f32.gmra.mxu0 %v527
        %v770 = vpop.f32.mrf.mxu0
        %v771 = vadd.f32 0.0, %v770
        %v772 = vpop.f32.mrf.mxu0
        %773 = vmatprep.mubr.f32.mxu0 0.0
        %774 = vmatmul.mubr.f32.gmra.mxu0 %v528
        %v775 = vpop.f32.mrf.mxu0
        %v776 = vadd.f32 0.0, %v775
        %v777 = vpop.f32.mrf.mxu0
        %778 = vmatprep.mubr.f32.mxu0 0.0
        %779 = vmatmul.mubr.f32.gmra.mxu0 %v529
        %v780 = vpop.f32.mrf.mxu0
        %v781 = vadd.f32 0.0, %v780
        %v782 = vpop.f32.mrf.mxu0
        %783 = vmatprep.mubr.f32.mxu0 0.0
        %784 = vmatmul.mubr.f32.gmra.mxu0 %v530
        %v785 = vpop.f32.mrf.mxu0
        %v786 = vadd.f32 0.0, %v785
        %v787 = vpop.f32.mrf.mxu0
        %788 = vmatprep.mubr.f32.mxu0 0.0
        %789 = vmatmul.mubr.f32.gmra.mxu0 %v531
        %v790 = vpop.f32.mrf.mxu0
        %v791 = vadd.f32 0.0, %v790
        %v792 = vpop.f32.mrf.mxu0
        %793 = vmatprep.mubr.f32.mxu0 0.0
        %794 = vmatmul.mubr.f32.gmra.mxu0 %v532
        %v795 = vpop.f32.mrf.mxu0
        %v796 = vadd.f32 0.0, %v795
        %v797 = vpop.f32.mrf.mxu0
        %798 = vdwg.mxu0
        %v799 = vadd.f32 %v501, %v648
        %v800 = vadd.f32 %v502, %v650
        %v801 = vadd.f32 %v503, %v761
        %v802 = vadd.f32 %v504, %v654
        %v803 = vadd.f32 %v505, %v656
        %v804 = vadd.f32 %v506, %v766
        %v805 = vadd.f32 %v507, %v660
        %v806 = vadd.f32 %v508, %v662
        %v807 = vadd.f32 %v509, %v771
        %v808 = vadd.f32 %v510, %v666
        %v809 = vadd.f32 %v511, %v668
        %v810 = vadd.f32 %v512, %v776
        %v811 = vadd.f32 %v513, %v672
        %v812 = vadd.f32 %v514, %v674
        %v813 = vadd.f32 %v515, %v781
        %v814 = vadd.f32 %v516, %v678
        %v815 = vadd.f32 %v517, %v680
        %v816 = vadd.f32 %v518, %v786
        %v817 = vadd.f32 %v519, %v684
        %v818 = vadd.f32 %v520, %v686
        %v819 = vadd.f32 %v521, %v791
        %v820 = vadd.f32 %v522, %v690
        %v821 = vadd.f32 %v523, %v692
        %v822 = vadd.f32 %v524, %v796
        %823 = vst [vmem:[#allocation2] sm:$0xff] %v799
        %824 = vst [vmem:[#allocation2 + $0x8] sm:$0xff] %v800
        %825 = vst [vmem:[#allocation2 + $0x10] sm:$0xff] %v801
        %826 = vst [vmem:[#allocation2 + $0x18] sm:$0xff] %v802
        %827 = vst [vmem:[#allocation2 + $0x20] sm:$0xff] %v803
        %828 = vst [vmem:[#allocation2 + $0x28] sm:$0xff] %v804
        %829 = vst [vmem:[#allocation2 + $0x30] sm:$0xff] %v805
        %830 = vst [vmem:[#allocation2 + $0x38] sm:$0xff] %v806
        %831 = vst [vmem:[#allocation2 + $0x40] sm:$0xff] %v807
        %832 = vst [vmem:[#allocation2 + $0x48] sm:$0xff] %v808
        %833 = vst [vmem:[#allocation2 + $0x50] sm:$0xff] %v809
        %834 = vst [vmem:[#allocation2 + $0x58] sm:$0xff] %v810
        %835 = vst [vmem:[#allocation2 + $0x60] sm:$0xff] %v811
        %836 = vst [vmem:[#allocation2 + $0x68] sm:$0xff] %v812
        %837 = vst [vmem:[#allocation2 + $0x70] sm:$0xff] %v813
        %838 = vst [vmem:[#allocation2 + $0x78] sm:$0xff] %v814
        %839 = vst [vmem:[#allocation2 + $0x80] sm:$0xff] %v815
        %840 = vst [vmem:[#allocation2 + $0x88] sm:$0xff] %v816
        %841 = vst [vmem:[#allocation2 + $0x90] sm:$0xff] %v817
        %842 = vst [vmem:[#allocation2 + $0x98] sm:$0xff] %v818
        %843 = vst [vmem:[#allocation2 + $0xa0] sm:$0xff] %v819
        %844 = vst [vmem:[#allocation2 + $0xa8] sm:$0xff] %v820
        %845 = vst [vmem:[#allocation2 + $0xb0] sm:$0xff] %v821
        %846 = vst [vmem:[#allocation2 + $0xb8] sm:$0xff] %v822
        // Predicated region
        $region57: #{tpu_custom_call.1} parent=47 // pred_check
          %p847 = pneg %p473
        $region58: #{tpu_custom_call.1} parent=47 // pred_check_branch
          %849 = sbr.rel (%p847) target = $region60
        $region59: #{tpu_custom_call.1} parent=47 // pred_region
          %v850 = vld [vmem:[#allocation2] sm:$0xff]
          %v851 = vld [vmem:[#allocation2 + $0x8] sm:$0xff]
          %v852 = vld [vmem:[#allocation2 + $0x10] sm:$0xff]
          %v853 = vld [vmem:[#allocation2 + $0x18] sm:$0xff]
          %v854 = vld [vmem:[#allocation2 + $0x20] sm:$0xff]
          %v855 = vld [vmem:[#allocation2 + $0x28] sm:$0xff]
          %v856 = vld [vmem:[#allocation2 + $0x30] sm:$0xff]
          %v857 = vld [vmem:[#allocation2 + $0x38] sm:$0xff]
          %v858 = vld [vmem:[#allocation2 + $0x40] sm:$0xff]
          %v859 = vld [vmem:[#allocation2 + $0x48] sm:$0xff]
          %v860 = vld [vmem:[#allocation2 + $0x50] sm:$0xff]
          %v861 = vld [vmem:[#allocation2 + $0x58] sm:$0xff]
          %v862 = vld [vmem:[#allocation2 + $0x60] sm:$0xff]
          %v863 = vld [vmem:[#allocation2 + $0x68] sm:$0xff]
          %v864 = vld [vmem:[#allocation2 + $0x70] sm:$0xff]
          %v865 = vld [vmem:[#allocation2 + $0x78] sm:$0xff]
          %v866 = vld [vmem:[#allocation2 + $0x80] sm:$0xff]
          %v867 = vld [vmem:[#allocation2 + $0x88] sm:$0xff]
          %v868 = vld [vmem:[#allocation2 + $0x90] sm:$0xff]
          %v869 = vld [vmem:[#allocation2 + $0x98] sm:$0xff]
          %v870 = vld [vmem:[#allocation2 + $0xa0] sm:$0xff]
          %v871 = vld [vmem:[#allocation2 + $0xa8] sm:$0xff]
          %v872 = vld [vmem:[#allocation2 + $0xb0] sm:$0xff]
          %v873 = vld [vmem:[#allocation2 + $0xb8] sm:$0xff]
          %v874 = vld [vmem:[%s2] sm:$0x7]
          %v876 = vlaneseq
          %v877 = vshrl.u32 %v876, 7
          %v878 = vsub.s32 0, %v877
          %v879 = vrot.slane %v874, %v878
          %v880 = vlaneseq
          %v881 = vshrl.u32 %v880, 7
          %v882 = vsub.s32 1, %v881
          %v883 = vrot.slane %v874, %v882
          %v884 = vlaneseq
          %v885 = vshrl.u32 %v884, 7
          %v886 = vsub.s32 2, %v885
          %v887 = vrot.slane %v874, %v886
          %v891 = vadd.f32 %v850, %v879
          %v892 = vadd.f32 %v851, %v883
          %v893 = vadd.f32 %v852, %v887
          %v894 = vadd.f32 %v853, %v879
          %v895 = vadd.f32 %v854, %v883
          %v896 = vadd.f32 %v855, %v887
          %v897 = vadd.f32 %v856, %v879
          %v898 = vadd.f32 %v857, %v883
          %v899 = vadd.f32 %v858, %v887
          %v900 = vadd.f32 %v859, %v879
          %v901 = vadd.f32 %v860, %v883
          %v902 = vadd.f32 %v861, %v887
          %v903 = vadd.f32 %v862, %v879
          %v904 = vadd.f32 %v863, %v883
          %v905 = vadd.f32 %v864, %v887
          %v906 = vadd.f32 %v865, %v879
          %v907 = vadd.f32 %v866, %v883
          %v908 = vadd.f32 %v867, %v887
          %v909 = vadd.f32 %v868, %v879
          %v910 = vadd.f32 %v869, %v883
          %v911 = vadd.f32 %v870, %v887
          %v912 = vadd.f32 %v871, %v879
          %v913 = vadd.f32 %v872, %v883
          %v914 = vadd.f32 %v873, %v887
          %v915 = vld [vmem:[%s462] sm:$0xff]
          %v916 = vld [vmem:[%s462 + $0x8] sm:$0xff]
          %v917 = vld [vmem:[%s462 + $0x10] sm:$0xff]
          %v918 = vld [vmem:[%s462 + $0x18] sm:$0xff]
          %v919 = vld [vmem:[%s462 + $0x20] sm:$0xff]
          %v920 = vld [vmem:[%s462 + $0x28] sm:$0xff]
          %v921 = vld [vmem:[%s462 + $0x30] sm:$0xff]
          %v922 = vld [vmem:[%s462 + $0x38] sm:$0xff]
          %v923 = vld [vmem:[%s468] sm:$0xff]
          %v924 = vld [vmem:[%s468 + $0x8] sm:$0xff]
          %v925 = vld [vmem:[%s468 + $0x10] sm:$0xff]
          %v926 = vld [vmem:[%s468 + $0x18] sm:$0xff]
          %v927 = vld [vmem:[%s468 + $0x20] sm:$0xff]
          %v928 = vld [vmem:[%s468 + $0x28] sm:$0xff]
          %v929 = vld [vmem:[%s468 + $0x30] sm:$0xff]
          %v930 = vld [vmem:[%s468 + $0x38] sm:$0xff]
          %v931 = vmul.f32 %v891, %v891
          %v932 = vmul.f32 %v894, %v894
          %v933 = vmul.f32 %v897, %v897
          %v934 = vmul.f32 %v900, %v900
          %v935 = vmul.f32 %v903, %v903
          %v936 = vmul.f32 %v906, %v906
          %v937 = vmul.f32 %v909, %v909
          %v938 = vmul.f32 %v912, %v912
          %939 = vadd.xlane.f32.xlu0 %v931
          %v940 = vpop.xlane.xlu0 %939
          %941 = vadd.xlane.f32.xlu0 %v932
          %v942 = vpop.xlane.xlu0 %941
          %943 = vadd.xlane.f32.xlu0 %v933
          %v944 = vpop.xlane.xlu0 %943
          %945 = vadd.xlane.f32.xlu0 %v934
          %v946 = vpop.xlane.xlu0 %945
          %947 = vadd.xlane.f32.xlu0 %v935
          %v948 = vpop.xlane.xlu0 %947
          %949 = vadd.xlane.f32.xlu0 %v936
          %v950 = vpop.xlane.xlu0 %949
          %951 = vadd.xlane.f32.xlu0 %v937
          %v952 = vpop.xlane.xlu0 %951
          %953 = vadd.xlane.f32.xlu0 %v938
          %v954 = vpop.xlane.xlu0 %953
          %v955 = vrcp.pop 128.0
          %v956 = vmul.f32 %v940, %v955
          %v957 = vmul.f32 %v942, %v955
          %v958 = vmul.f32 %v944, %v955
          %v959 = vmul.f32 %v946, %v955
          %v960 = vmul.f32 %v948, %v955
          %v961 = vmul.f32 %v950, %v955
          %v962 = vmul.f32 %v952, %v955
          %v963 = vmul.f32 %v954, %v955
          %v964 = vadd.f32 %v956, 1e-06
          %v965 = vadd.f32 %v957, 1e-06
          %v966 = vadd.f32 %v958, 1e-06
          %v967 = vadd.f32 %v959, 1e-06
          %v968 = vadd.f32 %v960, 1e-06
          %v969 = vadd.f32 %v961, 1e-06
          %v970 = vadd.f32 %v962, 1e-06
          %v971 = vadd.f32 %v963, 1e-06
          %v972 = vrsqrt.pop %v964
          %v973 = vrsqrt.pop %v965
          %v974 = vrsqrt.pop %v966
          %v975 = vrsqrt.pop %v967
          %v976 = vrsqrt.pop %v968
          %v977 = vrsqrt.pop %v969
          %v978 = vrsqrt.pop %v970
          %v979 = vrsqrt.pop %v971
          %v980 = vmul.f32 %v891, %v972
          %v981 = vmul.f32 %v894, %v973
          %v982 = vmul.f32 %v897, %v974
          %v983 = vmul.f32 %v900, %v975
          %v984 = vmul.f32 %v903, %v976
          %v985 = vmul.f32 %v906, %v977
          %v986 = vmul.f32 %v909, %v978
          %v987 = vmul.f32 %v912, %v979
          %v988 = vld [vmem:[%s3] sm:$0x1]
          %v990 = vlaneseq
          %v991 = vshrl.u32 %v990, 7
          %v992 = vsub.s32 0, %v991
          %v993 = vrot.slane %v988, %v992
          %v995 = vmul.f32 %v980, %v993
          %v996 = vmul.f32 %v981, %v993
          %v997 = vmul.f32 %v982, %v993
          %v998 = vmul.f32 %v983, %v993
          %v999 = vmul.f32 %v984, %v993
          %v1000 = vmul.f32 %v985, %v993
          %v1001 = vmul.f32 %v986, %v993
          %v1002 = vmul.f32 %v987, %v993
          %v1003 = vmul.f32 %v892, %v892
          %v1004 = vmul.f32 %v895, %v895
          %v1005 = vmul.f32 %v898, %v898
          %v1006 = vmul.f32 %v901, %v901
          %v1007 = vmul.f32 %v904, %v904
          %v1008 = vmul.f32 %v907, %v907
          %v1009 = vmul.f32 %v910, %v910
          %v1010 = vmul.f32 %v913, %v913
          %1011 = vadd.xlane.f32.xlu0 %v1003
          %v1012 = vpop.xlane.xlu0 %1011
          %1013 = vadd.xlane.f32.xlu0 %v1004
          %v1014 = vpop.xlane.xlu0 %1013
          %1015 = vadd.xlane.f32.xlu0 %v1005
          %v1016 = vpop.xlane.xlu0 %1015
          %1017 = vadd.xlane.f32.xlu0 %v1006
          %v1018 = vpop.xlane.xlu0 %1017
          %1019 = vadd.xlane.f32.xlu0 %v1007
          %v1020 = vpop.xlane.xlu0 %1019
          %1021 = vadd.xlane.f32.xlu0 %v1008
          %v1022 = vpop.xlane.xlu0 %1021
          %1023 = vadd.xlane.f32.xlu0 %v1009
          %v1024 = vpop.xlane.xlu0 %1023
          %1025 = vadd.xlane.f32.xlu0 %v1010
          %v1026 = vpop.xlane.xlu0 %1025
          %v1027 = vmul.f32 %v1012, %v955
          %v1028 = vmul.f32 %v1014, %v955
          %v1029 = vmul.f32 %v1016, %v955
          %v1030 = vmul.f32 %v1018, %v955
          %v1031 = vmul.f32 %v1020, %v955
          %v1032 = vmul.f32 %v1022, %v955
          %v1033 = vmul.f32 %v1024, %v955
          %v1034 = vmul.f32 %v1026, %v955
          %v1035 = vadd.f32 %v1027, 1e-06
          %v1036 = vadd.f32 %v1028, 1e-06
          %v1037 = vadd.f32 %v1029, 1e-06
          %v1038 = vadd.f32 %v1030, 1e-06
          %v1039 = vadd.f32 %v1031, 1e-06
          %v1040 = vadd.f32 %v1032, 1e-06
          %v1041 = vadd.f32 %v1033, 1e-06
          %v1042 = vadd.f32 %v1034, 1e-06
          %v1043 = vrsqrt.pop %v1035
          %v1044 = vrsqrt.pop %v1036
          %v1045 = vrsqrt.pop %v1037
          %v1046 = vrsqrt.pop %v1038
          %v1047 = vrsqrt.pop %v1039
          %v1048 = vrsqrt.pop %v1040
          %v1049 = vrsqrt.pop %v1041
          %v1050 = vrsqrt.pop %v1042
          %v1051 = vmul.f32 %v892, %v1043
          %v1052 = vmul.f32 %v895, %v1044
          %v1053 = vmul.f32 %v898, %v1045
          %v1054 = vmul.f32 %v901, %v1046
          %v1055 = vmul.f32 %v904, %v1047
          %v1056 = vmul.f32 %v907, %v1048
          %v1057 = vmul.f32 %v910, %v1049
          %v1058 = vmul.f32 %v913, %v1050
          %v1059 = vld [vmem:[%s4] sm:$0x1]
          %v1061 = vlaneseq
          %v1062 = vshrl.u32 %v1061, 7
          %v1063 = vsub.s32 0, %v1062
          %v1064 = vrot.slane %v1059, %v1063
          %v1066 = vmul.f32 %v1051, %v1064
          %v1067 = vmul.f32 %v1052, %v1064
          %v1068 = vmul.f32 %v1053, %v1064
          %v1069 = vmul.f32 %v1054, %v1064
          %v1070 = vmul.f32 %v1055, %v1064
          %v1071 = vmul.f32 %v1056, %v1064
          %v1072 = vmul.f32 %v1057, %v1064
          %v1073 = vmul.f32 %v1058, %v1064
          %v1074 = vmul.f32 %v995, %v915
          %v1075 = vmul.f32 %v996, %v916
          %v1076 = vmul.f32 %v997, %v917
          %v1077 = vmul.f32 %v998, %v918
          %v1078 = vmul.f32 %v999, %v919
          %v1079 = vmul.f32 %v1000, %v920
          %v1080 = vmul.f32 %v1001, %v921
          %v1081 = vmul.f32 %v1002, %v922
          %1090 = vrot.lane.b32.xlu0 %v923, 16
          %v1091 = vpop.permute.xlu0 %1090
          %1092 = vrot.lane.b32.xlu0 %v924, 16
          %v1093 = vpop.permute.xlu0 %1092
          %1094 = vrot.lane.b32.xlu0 %v925, 16
          %v1095 = vpop.permute.xlu0 %1094
          %1096 = vrot.lane.b32.xlu0 %v926, 16
          %v1097 = vpop.permute.xlu0 %1096
          %1098 = vrot.lane.b32.xlu0 %v927, 16
          %v1099 = vpop.permute.xlu0 %1098
          %1100 = vrot.lane.b32.xlu0 %v928, 16
          %v1101 = vpop.permute.xlu0 %1100
          %1102 = vrot.lane.b32.xlu0 %v929, 16
          %v1103 = vpop.permute.xlu0 %1102
          %1104 = vrot.lane.b32.xlu0 %v930, 16
          %v1105 = vpop.permute.xlu0 %1104
          %v1114 = vmul.f32 %v995, %v1091
          %v1115 = vmul.f32 %v996, %v1093
          %v1116 = vmul.f32 %v997, %v1095
          %v1117 = vmul.f32 %v998, %v1097
          %v1118 = vmul.f32 %v999, %v1099
          %v1119 = vmul.f32 %v1000, %v1101
          %v1120 = vmul.f32 %v1001, %v1103
          %v1121 = vmul.f32 %v1002, %v1105
          %1130 = vrot.lane.b32.xlu0 %v1114, 112
          %v1131 = vpop.permute.xlu0 %1130
          %1132 = vrot.lane.b32.xlu0 %v1115, 112
          %v1133 = vpop.permute.xlu0 %1132
          %1134 = vrot.lane.b32.xlu0 %v1116, 112
          %v1135 = vpop.permute.xlu0 %1134
          %1136 = vrot.lane.b32.xlu0 %v1117, 112
          %v1137 = vpop.permute.xlu0 %1136
          %1138 = vrot.lane.b32.xlu0 %v1118, 112
          %v1139 = vpop.permute.xlu0 %1138
          %1140 = vrot.lane.b32.xlu0 %v1119, 112
          %v1141 = vpop.permute.xlu0 %1140
          %1142 = vrot.lane.b32.xlu0 %v1120, 112
          %v1143 = vpop.permute.xlu0 %1142
          %1144 = vrot.lane.b32.xlu0 %v1121, 112
          %v1145 = vpop.permute.xlu0 %1144
          %v1154 = vsub.f32 %v1074, %v1131
          %v1155 = vsub.f32 %v1075, %v1133
          %v1156 = vsub.f32 %v1076, %v1135
          %v1157 = vsub.f32 %v1077, %v1137
          %v1158 = vsub.f32 %v1078, %v1139
          %v1159 = vsub.f32 %v1079, %v1141
          %v1160 = vsub.f32 %v1080, %v1143
          %v1161 = vsub.f32 %v1081, %v1145
          %1170 = vrot.lane.b32.xlu0 %v915, 16
          %v1171 = vpop.permute.xlu0 %1170
          %1172 = vrot.lane.b32.xlu0 %v916, 16
          %v1173 = vpop.permute.xlu0 %1172
          %1174 = vrot.lane.b32.xlu0 %v917, 16
          %v1175 = vpop.permute.xlu0 %1174
          %1176 = vrot.lane.b32.xlu0 %v918, 16
          %v1177 = vpop.permute.xlu0 %1176
          %1178 = vrot.lane.b32.xlu0 %v919, 16
          %v1179 = vpop.permute.xlu0 %1178
          %1180 = vrot.lane.b32.xlu0 %v920, 16
          %v1181 = vpop.permute.xlu0 %1180
          %1182 = vrot.lane.b32.xlu0 %v921, 16
          %v1183 = vpop.permute.xlu0 %1182
          %1184 = vrot.lane.b32.xlu0 %v922, 16
          %v1185 = vpop.permute.xlu0 %1184
          %v1194 = vmul.f32 %v995, %v1171
          %v1195 = vmul.f32 %v996, %v1173
          %v1196 = vmul.f32 %v997, %v1175
          %v1197 = vmul.f32 %v998, %v1177
          %v1198 = vmul.f32 %v999, %v1179
          %v1199 = vmul.f32 %v1000, %v1181
          %v1200 = vmul.f32 %v1001, %v1183
          %v1201 = vmul.f32 %v1002, %v1185
          %v1202 = vmul.f32 %v995, %v923
          %v1203 = vmul.f32 %v996, %v924
          %v1204 = vmul.f32 %v997, %v925
          %v1205 = vmul.f32 %v998, %v926
          %v1206 = vmul.f32 %v999, %v927
          %v1207 = vmul.f32 %v1000, %v928
          %v1208 = vmul.f32 %v1001, %v929
          %v1209 = vmul.f32 %v1002, %v930
          %1218 = vrot.lane.b32.xlu0 %v1202, 16
          %v1219 = vpop.permute.xlu0 %1218
          %1220 = vrot.lane.b32.xlu0 %v1203, 16
          %v1221 = vpop.permute.xlu0 %1220
          %1222 = vrot.lane.b32.xlu0 %v1204, 16
          %v1223 = vpop.permute.xlu0 %1222
          %1224 = vrot.lane.b32.xlu0 %v1205, 16
          %v1225 = vpop.permute.xlu0 %1224
          %1226 = vrot.lane.b32.xlu0 %v1206, 16
          %v1227 = vpop.permute.xlu0 %1226
          %1228 = vrot.lane.b32.xlu0 %v1207, 16
          %v1229 = vpop.permute.xlu0 %1228
          %1230 = vrot.lane.b32.xlu0 %v1208, 16
          %v1231 = vpop.permute.xlu0 %1230
          %1232 = vrot.lane.b32.xlu0 %v1209, 16
          %v1233 = vpop.permute.xlu0 %1232
          %v1242 = vadd.f32 %v1194, %v1219
          %v1243 = vadd.f32 %v1195, %v1221
          %v1244 = vadd.f32 %v1196, %v1223
          %v1245 = vadd.f32 %v1197, %v1225
          %v1246 = vadd.f32 %v1198, %v1227
          %v1247 = vadd.f32 %v1199, %v1229
          %v1248 = vadd.f32 %v1200, %v1231
          %v1249 = vadd.f32 %v1201, %v1233
          %v1250 = vmul.f32 %v1066, %v915
          %v1251 = vmul.f32 %v1067, %v916
          %v1252 = vmul.f32 %v1068, %v917
          %v1253 = vmul.f32 %v1069, %v918
          %v1254 = vmul.f32 %v1070, %v919
          %v1255 = vmul.f32 %v1071, %v920
          %v1256 = vmul.f32 %v1072, %v921
          %v1257 = vmul.f32 %v1073, %v922
          %v1258 = vmul.f32 %v1066, %v1091
          %v1259 = vmul.f32 %v1067, %v1093
          %v1260 = vmul.f32 %v1068, %v1095
          %v1261 = vmul.f32 %v1069, %v1097
          %v1262 = vmul.f32 %v1070, %v1099
          %v1263 = vmul.f32 %v1071, %v1101
          %v1264 = vmul.f32 %v1072, %v1103
          %v1265 = vmul.f32 %v1073, %v1105
          %1274 = vrot.lane.b32.xlu0 %v1258, 112
          %v1275 = vpop.permute.xlu0 %1274
          %1276 = vrot.lane.b32.xlu0 %v1259, 112
          %v1277 = vpop.permute.xlu0 %1276
          %1278 = vrot.lane.b32.xlu0 %v1260, 112
          %v1279 = vpop.permute.xlu0 %1278
          %1280 = vrot.lane.b32.xlu0 %v1261, 112
          %v1281 = vpop.permute.xlu0 %1280
          %1282 = vrot.lane.b32.xlu0 %v1262, 112
          %v1283 = vpop.permute.xlu0 %1282
          %1284 = vrot.lane.b32.xlu0 %v1263, 112
          %v1285 = vpop.permute.xlu0 %1284
          %1286 = vrot.lane.b32.xlu0 %v1264, 112
          %v1287 = vpop.permute.xlu0 %1286
          %1288 = vrot.lane.b32.xlu0 %v1265, 112
          %v1289 = vpop.permute.xlu0 %1288
          %v1298 = vsub.f32 %v1250, %v1275
          %v1299 = vsub.f32 %v1251, %v1277
          %v1300 = vsub.f32 %v1252, %v1279
          %v1301 = vsub.f32 %v1253, %v1281
          %v1302 = vsub.f32 %v1254, %v1283
          %v1303 = vsub.f32 %v1255, %v1285
          %v1304 = vsub.f32 %v1256, %v1287
          %v1305 = vsub.f32 %v1257, %v1289
          %v1306 = vmul.f32 %v1066, %v1171
          %v1307 = vmul.f32 %v1067, %v1173
          %v1308 = vmul.f32 %v1068, %v1175
          %v1309 = vmul.f32 %v1069, %v1177
          %v1310 = vmul.f32 %v1070, %v1179
          %v1311 = vmul.f32 %v1071, %v1181
          %v1312 = vmul.f32 %v1072, %v1183
          %v1313 = vmul.f32 %v1073, %v1185
          %v1314 = vmul.f32 %v1066, %v923
          %v1315 = vmul.f32 %v1067, %v924
          %v1316 = vmul.f32 %v1068, %v925
          %v1317 = vmul.f32 %v1069, %v926
          %v1318 = vmul.f32 %v1070, %v927
          %v1319 = vmul.f32 %v1071, %v928
          %v1320 = vmul.f32 %v1072, %v929
          %v1321 = vmul.f32 %v1073, %v930
          %1330 = vrot.lane.b32.xlu0 %v1314, 16
          %v1331 = vpop.permute.xlu0 %1330
          %1332 = vrot.lane.b32.xlu0 %v1315, 16
          %v1333 = vpop.permute.xlu0 %1332
          %1334 = vrot.lane.b32.xlu0 %v1316, 16
          %v1335 = vpop.permute.xlu0 %1334
          %1336 = vrot.lane.b32.xlu0 %v1317, 16
          %v1337 = vpop.permute.xlu0 %1336
          %1338 = vrot.lane.b32.xlu0 %v1318, 16
          %v1339 = vpop.permute.xlu0 %1338
          %1340 = vrot.lane.b32.xlu0 %v1319, 16
          %v1341 = vpop.permute.xlu0 %1340
          %1342 = vrot.lane.b32.xlu0 %v1320, 16
          %v1343 = vpop.permute.xlu0 %1342
          %1344 = vrot.lane.b32.xlu0 %v1321, 16
          %v1345 = vpop.permute.xlu0 %1344
          %v1354 = vadd.f32 %v1306, %v1331
          %v1355 = vadd.f32 %v1307, %v1333
          %v1356 = vadd.f32 %v1308, %v1335
          %v1357 = vadd.f32 %v1309, %v1337
          %v1358 = vadd.f32 %v1310, %v1339
          %v1359 = vadd.f32 %v1311, %v1341
          %v1360 = vadd.f32 %v1312, %v1343
          %v1361 = vadd.f32 %v1313, %v1345
          %1362 = vrot.lane.b32.xlu0 %v915, 32
          %v1363 = vpop.permute.xlu0 %1362
          %1364 = vrot.lane.b32.xlu0 %v916, 32
          %v1365 = vpop.permute.xlu0 %1364
          %1366 = vrot.lane.b32.xlu0 %v917, 32
          %v1367 = vpop.permute.xlu0 %1366
          %1368 = vrot.lane.b32.xlu0 %v918, 32
          %v1369 = vpop.permute.xlu0 %1368
          %1370 = vrot.lane.b32.xlu0 %v919, 32
          %v1371 = vpop.permute.xlu0 %1370
          %1372 = vrot.lane.b32.xlu0 %v920, 32
          %v1373 = vpop.permute.xlu0 %1372
          %1374 = vrot.lane.b32.xlu0 %v921, 32
          %v1375 = vpop.permute.xlu0 %1374
          %1376 = vrot.lane.b32.xlu0 %v922, 32
          %v1377 = vpop.permute.xlu0 %1376
          %v1386 = vmul.f32 %v995, %v1363
          %v1387 = vmul.f32 %v996, %v1365
          %v1388 = vmul.f32 %v997, %v1367
          %v1389 = vmul.f32 %v998, %v1369
          %v1390 = vmul.f32 %v999, %v1371
          %v1391 = vmul.f32 %v1000, %v1373
          %v1392 = vmul.f32 %v1001, %v1375
          %v1393 = vmul.f32 %v1002, %v1377
          %1394 = vrot.lane.b32.xlu0 %v923, 48
          %v1395 = vpop.permute.xlu0 %1394
          %1396 = vrot.lane.b32.xlu0 %v924, 48
          %v1397 = vpop.permute.xlu0 %1396
          %1398 = vrot.lane.b32.xlu0 %v925, 48
          %v1399 = vpop.permute.xlu0 %1398
          %1400 = vrot.lane.b32.xlu0 %v926, 48
          %v1401 = vpop.permute.xlu0 %1400
          %1402 = vrot.lane.b32.xlu0 %v927, 48
          %v1403 = vpop.permute.xlu0 %1402
          %1404 = vrot.lane.b32.xlu0 %v928, 48
          %v1405 = vpop.permute.xlu0 %1404
          %1406 = vrot.lane.b32.xlu0 %v929, 48
          %v1407 = vpop.permute.xlu0 %1406
          %1408 = vrot.lane.b32.xlu0 %v930, 48
          %v1409 = vpop.permute.xlu0 %1408
          %v1418 = vmul.f32 %v995, %v1395
          %v1419 = vmul.f32 %v996, %v1397
          %v1420 = vmul.f32 %v997, %v1399
          %v1421 = vmul.f32 %v998, %v1401
          %v1422 = vmul.f32 %v999, %v1403
          %v1423 = vmul.f32 %v1000, %v1405
          %v1424 = vmul.f32 %v1001, %v1407
          %v1425 = vmul.f32 %v1002, %v1409
          %1434 = vrot.lane.b32.xlu0 %v1418, 112
          %v1435 = vpop.permute.xlu0 %1434
          %1436 = vrot.lane.b32.xlu0 %v1419, 112
          %v1437 = vpop.permute.xlu0 %1436
          %1438 = vrot.lane.b32.xlu0 %v1420, 112
          %v1439 = vpop.permute.xlu0 %1438
          %1440 = vrot.lane.b32.xlu0 %v1421, 112
          %v1441 = vpop.permute.xlu0 %1440
          %1442 = vrot.lane.b32.xlu0 %v1422, 112
          %v1443 = vpop.permute.xlu0 %1442
          %1444 = vrot.lane.b32.xlu0 %v1423, 112
          %v1445 = vpop.permute.xlu0 %1444
          %1446 = vrot.lane.b32.xlu0 %v1424, 112
          %v1447 = vpop.permute.xlu0 %1446
          %1448 = vrot.lane.b32.xlu0 %v1425, 112
          %v1449 = vpop.permute.xlu0 %1448
          %v1458 = vsub.f32 %v1386, %v1435
          %v1459 = vsub.f32 %v1387, %v1437
          %v1460 = vsub.f32 %v1388, %v1439
          %v1461 = vsub.f32 %v1389, %v1441
          %v1462 = vsub.f32 %v1390, %v1443
          %v1463 = vsub.f32 %v1391, %v1445
          %v1464 = vsub.f32 %v1392, %v1447
          %v1465 = vsub.f32 %v1393, %v1449
          %1466 = vrot.lane.b32.xlu0 %v915, 48
          %v1467 = vpop.permute.xlu0 %1466
          %1468 = vrot.lane.b32.xlu0 %v916, 48
          %v1469 = vpop.permute.xlu0 %1468
          %1470 = vrot.lane.b32.xlu0 %v917, 48
          %v1471 = vpop.permute.xlu0 %1470
          %1472 = vrot.lane.b32.xlu0 %v918, 48
          %v1473 = vpop.permute.xlu0 %1472
          %1474 = vrot.lane.b32.xlu0 %v919, 48
          %v1475 = vpop.permute.xlu0 %1474
          %1476 = vrot.lane.b32.xlu0 %v920, 48
          %v1477 = vpop.permute.xlu0 %1476
          %1478 = vrot.lane.b32.xlu0 %v921, 48
          %v1479 = vpop.permute.xlu0 %1478
          %1480 = vrot.lane.b32.xlu0 %v922, 48
          %v1481 = vpop.permute.xlu0 %1480
          %v1490 = vmul.f32 %v995, %v1467
          %v1491 = vmul.f32 %v996, %v1469
          %v1492 = vmul.f32 %v997, %v1471
          %v1493 = vmul.f32 %v998, %v1473
          %v1494 = vmul.f32 %v999, %v1475
          %v1495 = vmul.f32 %v1000, %v1477
          %v1496 = vmul.f32 %v1001, %v1479
          %v1497 = vmul.f32 %v1002, %v1481
          %1498 = vrot.lane.b32.xlu0 %v923, 32
          %v1499 = vpop.permute.xlu0 %1498
          %1500 = vrot.lane.b32.xlu0 %v924, 32
          %v1501 = vpop.permute.xlu0 %1500
          %1502 = vrot.lane.b32.xlu0 %v925, 32
          %v1503 = vpop.permute.xlu0 %1502
          %1504 = vrot.lane.b32.xlu0 %v926, 32
          %v1505 = vpop.permute.xlu0 %1504
          %1506 = vrot.lane.b32.xlu0 %v927, 32
          %v1507 = vpop.permute.xlu0 %1506
          %1508 = vrot.lane.b32.xlu0 %v928, 32
          %v1509 = vpop.permute.xlu0 %1508
          %1510 = vrot.lane.b32.xlu0 %v929, 32
          %v1511 = vpop.permute.xlu0 %1510
          %1512 = vrot.lane.b32.xlu0 %v930, 32
          %v1513 = vpop.permute.xlu0 %1512
          %v1522 = vmul.f32 %v995, %v1499
          %v1523 = vmul.f32 %v996, %v1501
          %v1524 = vmul.f32 %v997, %v1503
          %v1525 = vmul.f32 %v998, %v1505
          %v1526 = vmul.f32 %v999, %v1507
          %v1527 = vmul.f32 %v1000, %v1509
          %v1528 = vmul.f32 %v1001, %v1511
          %v1529 = vmul.f32 %v1002, %v1513
          %1538 = vrot.lane.b32.xlu0 %v1522, 16
          %v1539 = vpop.permute.xlu0 %1538
          %1540 = vrot.lane.b32.xlu0 %v1523, 16
          %v1541 = vpop.permute.xlu0 %1540
          %1542 = vrot.lane.b32.xlu0 %v1524, 16
          %v1543 = vpop.permute.xlu0 %1542
          %1544 = vrot.lane.b32.xlu0 %v1525, 16
          %v1545 = vpop.permute.xlu0 %1544
          %1546 = vrot.lane.b32.xlu0 %v1526, 16
          %v1547 = vpop.permute.xlu0 %1546
          %1548 = vrot.lane.b32.xlu0 %v1527, 16
          %v1549 = vpop.permute.xlu0 %1548
          %1550 = vrot.lane.b32.xlu0 %v1528, 16
          %v1551 = vpop.permute.xlu0 %1550
          %1552 = vrot.lane.b32.xlu0 %v1529, 16
          %v1553 = vpop.permute.xlu0 %1552
          %v1562 = vadd.f32 %v1490, %v1539
          %v1563 = vadd.f32 %v1491, %v1541
          %v1564 = vadd.f32 %v1492, %v1543
          %v1565 = vadd.f32 %v1493, %v1545
          %v1566 = vadd.f32 %v1494, %v1547
          %v1567 = vadd.f32 %v1495, %v1549
          %v1568 = vadd.f32 %v1496, %v1551
          %v1569 = vadd.f32 %v1497, %v1553
          %v1570 = vmul.f32 %v1066, %v1363
          %v1571 = vmul.f32 %v1067, %v1365
          %v1572 = vmul.f32 %v1068, %v1367
          %v1573 = vmul.f32 %v1069, %v1369
          %v1574 = vmul.f32 %v1070, %v1371
          %v1575 = vmul.f32 %v1071, %v1373
          %v1576 = vmul.f32 %v1072, %v1375
          %v1577 = vmul.f32 %v1073, %v1377
          %v1578 = vmul.f32 %v1066, %v1395
          %v1579 = vmul.f32 %v1067, %v1397
          %v1580 = vmul.f32 %v1068, %v1399
          %v1581 = vmul.f32 %v1069, %v1401
          %v1582 = vmul.f32 %v1070, %v1403
          %v1583 = vmul.f32 %v1071, %v1405
          %v1584 = vmul.f32 %v1072, %v1407
          %v1585 = vmul.f32 %v1073, %v1409
          %1594 = vrot.lane.b32.xlu0 %v1578, 112
          %v1595 = vpop.permute.xlu0 %1594
          %1596 = vrot.lane.b32.xlu0 %v1579, 112
          %v1597 = vpop.permute.xlu0 %1596
          %1598 = vrot.lane.b32.xlu0 %v1580, 112
          %v1599 = vpop.permute.xlu0 %1598
          %1600 = vrot.lane.b32.xlu0 %v1581, 112
          %v1601 = vpop.permute.xlu0 %1600
          %1602 = vrot.lane.b32.xlu0 %v1582, 112
          %v1603 = vpop.permute.xlu0 %1602
          %1604 = vrot.lane.b32.xlu0 %v1583, 112
          %v1605 = vpop.permute.xlu0 %1604
          %1606 = vrot.lane.b32.xlu0 %v1584, 112
          %v1607 = vpop.permute.xlu0 %1606
          %1608 = vrot.lane.b32.xlu0 %v1585, 112
          %v1609 = vpop.permute.xlu0 %1608
          %v1618 = vsub.f32 %v1570, %v1595
          %v1619 = vsub.f32 %v1571, %v1597
          %v1620 = vsub.f32 %v1572, %v1599
          %v1621 = vsub.f32 %v1573, %v1601
          %v1622 = vsub.f32 %v1574, %v1603
          %v1623 = vsub.f32 %v1575, %v1605
          %v1624 = vsub.f32 %v1576, %v1607
          %v1625 = vsub.f32 %v1577, %v1609
          %v1626 = vmul.f32 %v1066, %v1467
          %v1627 = vmul.f32 %v1067, %v1469
          %v1628 = vmul.f32 %v1068, %v1471
          %v1629 = vmul.f32 %v1069, %v1473
          %v1630 = vmul.f32 %v1070, %v1475
          %v1631 = vmul.f32 %v1071, %v1477
          %v1632 = vmul.f32 %v1072, %v1479
          %v1633 = vmul.f32 %v1073, %v1481
          %v1634 = vmul.f32 %v1066, %v1499
          %v1635 = vmul.f32 %v1067, %v1501
          %v1636 = vmul.f32 %v1068, %v1503
          %v1637 = vmul.f32 %v1069, %v1505
          %v1638 = vmul.f32 %v1070, %v1507
          %v1639 = vmul.f32 %v1071, %v1509
          %v1640 = vmul.f32 %v1072, %v1511
          %v1641 = vmul.f32 %v1073, %v1513
          %1650 = vrot.lane.b32.xlu0 %v1634, 16
          %v1651 = vpop.permute.xlu0 %1650
          %1652 = vrot.lane.b32.xlu0 %v1635, 16
          %v1653 = vpop.permute.xlu0 %1652
          %1654 = vrot.lane.b32.xlu0 %v1636, 16
          %v1655 = vpop.permute.xlu0 %1654
          %1656 = vrot.lane.b32.xlu0 %v1637, 16
          %v1657 = vpop.permute.xlu0 %1656
          %1658 = vrot.lane.b32.xlu0 %v1638, 16
          %v1659 = vpop.permute.xlu0 %1658
          %1660 = vrot.lane.b32.xlu0 %v1639, 16
          %v1661 = vpop.permute.xlu0 %1660
          %1662 = vrot.lane.b32.xlu0 %v1640, 16
          %v1663 = vpop.permute.xlu0 %1662
          %1664 = vrot.lane.b32.xlu0 %v1641, 16
          %v1665 = vpop.permute.xlu0 %1664
          %v1674 = vadd.f32 %v1626, %v1651
          %v1675 = vadd.f32 %v1627, %v1653
          %v1676 = vadd.f32 %v1628, %v1655
          %v1677 = vadd.f32 %v1629, %v1657
          %v1678 = vadd.f32 %v1630, %v1659
          %v1679 = vadd.f32 %v1631, %v1661
          %v1680 = vadd.f32 %v1632, %v1663
          %v1681 = vadd.f32 %v1633, %v1665
          %1682 = vrot.lane.b32.xlu0 %v915, 64
          %v1683 = vpop.permute.xlu0 %1682
          %1684 = vrot.lane.b32.xlu0 %v916, 64
          %v1685 = vpop.permute.xlu0 %1684
          %1686 = vrot.lane.b32.xlu0 %v917, 64
          %v1687 = vpop.permute.xlu0 %1686
          %1688 = vrot.lane.b32.xlu0 %v918, 64
          %v1689 = vpop.permute.xlu0 %1688
          %1690 = vrot.lane.b32.xlu0 %v919, 64
          %v1691 = vpop.permute.xlu0 %1690
          %1692 = vrot.lane.b32.xlu0 %v920, 64
          %v1693 = vpop.permute.xlu0 %1692
          %1694 = vrot.lane.b32.xlu0 %v921, 64
          %v1695 = vpop.permute.xlu0 %1694
          %1696 = vrot.lane.b32.xlu0 %v922, 64
          %v1697 = vpop.permute.xlu0 %1696
          %v1706 = vmul.f32 %v995, %v1683
          %v1707 = vmul.f32 %v996, %v1685
          %v1708 = vmul.f32 %v997, %v1687
          %v1709 = vmul.f32 %v998, %v1689
          %v1710 = vmul.f32 %v999, %v1691
          %v1711 = vmul.f32 %v1000, %v1693
          %v1712 = vmul.f32 %v1001, %v1695
          %v1713 = vmul.f32 %v1002, %v1697
          %1714 = vrot.lane.b32.xlu0 %v923, 80
          %v1715 = vpop.permute.xlu0 %1714
          %1716 = vrot.lane.b32.xlu0 %v924, 80
          %v1717 = vpop.permute.xlu0 %1716
          %1718 = vrot.lane.b32.xlu0 %v925, 80
          %v1719 = vpop.permute.xlu0 %1718
          %1720 = vrot.lane.b32.xlu0 %v926, 80
          %v1721 = vpop.permute.xlu0 %1720
          %1722 = vrot.lane.b32.xlu0 %v927, 80
          %v1723 = vpop.permute.xlu0 %1722
          %1724 = vrot.lane.b32.xlu0 %v928, 80
          %v1725 = vpop.permute.xlu0 %1724
          %1726 = vrot.lane.b32.xlu0 %v929, 80
          %v1727 = vpop.permute.xlu0 %1726
          %1728 = vrot.lane.b32.xlu0 %v930, 80
          %v1729 = vpop.permute.xlu0 %1728
          %v1738 = vmul.f32 %v995, %v1715
          %v1739 = vmul.f32 %v996, %v1717
          %v1740 = vmul.f32 %v997, %v1719
          %v1741 = vmul.f32 %v998, %v1721
          %v1742 = vmul.f32 %v999, %v1723
          %v1743 = vmul.f32 %v1000, %v1725
          %v1744 = vmul.f32 %v1001, %v1727
          %v1745 = vmul.f32 %v1002, %v1729
          %1754 = vrot.lane.b32.xlu0 %v1738, 112
          %v1755 = vpop.permute.xlu0 %1754
          %1756 = vrot.lane.b32.xlu0 %v1739, 112
          %v1757 = vpop.permute.xlu0 %1756
          %1758 = vrot.lane.b32.xlu0 %v1740, 112
          %v1759 = vpop.permute.xlu0 %1758
          %1760 = vrot.lane.b32.xlu0 %v1741, 112
          %v1761 = vpop.permute.xlu0 %1760
          %1762 = vrot.lane.b32.xlu0 %v1742, 112
          %v1763 = vpop.permute.xlu0 %1762
          %1764 = vrot.lane.b32.xlu0 %v1743, 112
          %v1765 = vpop.permute.xlu0 %1764
          %1766 = vrot.lane.b32.xlu0 %v1744, 112
          %v1767 = vpop.permute.xlu0 %1766
          %1768 = vrot.lane.b32.xlu0 %v1745, 112
          %v1769 = vpop.permute.xlu0 %1768
          %v1778 = vsub.f32 %v1706, %v1755
          %v1779 = vsub.f32 %v1707, %v1757
          %v1780 = vsub.f32 %v1708, %v1759
          %v1781 = vsub.f32 %v1709, %v1761
          %v1782 = vsub.f32 %v1710, %v1763
          %v1783 = vsub.f32 %v1711, %v1765
          %v1784 = vsub.f32 %v1712, %v1767
          %v1785 = vsub.f32 %v1713, %v1769
          %1786 = vrot.lane.b32.xlu0 %v915, 80
          %v1787 = vpop.permute.xlu0 %1786
          %1788 = vrot.lane.b32.xlu0 %v916, 80
          %v1789 = vpop.permute.xlu0 %1788
          %1790 = vrot.lane.b32.xlu0 %v917, 80
          %v1791 = vpop.permute.xlu0 %1790
          %1792 = vrot.lane.b32.xlu0 %v918, 80
          %v1793 = vpop.permute.xlu0 %1792
          %1794 = vrot.lane.b32.xlu0 %v919, 80
          %v1795 = vpop.permute.xlu0 %1794
          %1796 = vrot.lane.b32.xlu0 %v920, 80
          %v1797 = vpop.permute.xlu0 %1796
          %1798 = vrot.lane.b32.xlu0 %v921, 80
          %v1799 = vpop.permute.xlu0 %1798
          %1800 = vrot.lane.b32.xlu0 %v922, 80
          %v1801 = vpop.permute.xlu0 %1800
          %v1810 = vmul.f32 %v995, %v1787
          %v1811 = vmul.f32 %v996, %v1789
          %v1812 = vmul.f32 %v997, %v1791
          %v1813 = vmul.f32 %v998, %v1793
          %v1814 = vmul.f32 %v999, %v1795
          %v1815 = vmul.f32 %v1000, %v1797
          %v1816 = vmul.f32 %v1001, %v1799
          %v1817 = vmul.f32 %v1002, %v1801
          %1818 = vrot.lane.b32.xlu0 %v923, 64
          %v1819 = vpop.permute.xlu0 %1818
          %1820 = vrot.lane.b32.xlu0 %v924, 64
          %v1821 = vpop.permute.xlu0 %1820
          %1822 = vrot.lane.b32.xlu0 %v925, 64
          %v1823 = vpop.permute.xlu0 %1822
          %1824 = vrot.lane.b32.xlu0 %v926, 64
          %v1825 = vpop.permute.xlu0 %1824
          %1826 = vrot.lane.b32.xlu0 %v927, 64
          %v1827 = vpop.permute.xlu0 %1826
          %1828 = vrot.lane.b32.xlu0 %v928, 64
          %v1829 = vpop.permute.xlu0 %1828
          %1830 = vrot.lane.b32.xlu0 %v929, 64
          %v1831 = vpop.permute.xlu0 %1830
          %1832 = vrot.lane.b32.xlu0 %v930, 64
          %v1833 = vpop.permute.xlu0 %1832
          %v1842 = vmul.f32 %v995, %v1819
          %v1843 = vmul.f32 %v996, %v1821
          %v1844 = vmul.f32 %v997, %v1823
          %v1845 = vmul.f32 %v998, %v1825
          %v1846 = vmul.f32 %v999, %v1827
          %v1847 = vmul.f32 %v1000, %v1829
          %v1848 = vmul.f32 %v1001, %v1831
          %v1849 = vmul.f32 %v1002, %v1833
          %1858 = vrot.lane.b32.xlu0 %v1842, 16
          %v1859 = vpop.permute.xlu0 %1858
          %1860 = vrot.lane.b32.xlu0 %v1843, 16
          %v1861 = vpop.permute.xlu0 %1860
          %1862 = vrot.lane.b32.xlu0 %v1844, 16
          %v1863 = vpop.permute.xlu0 %1862
          %1864 = vrot.lane.b32.xlu0 %v1845, 16
          %v1865 = vpop.permute.xlu0 %1864
          %1866 = vrot.lane.b32.xlu0 %v1846, 16
          %v1867 = vpop.permute.xlu0 %1866
          %1868 = vrot.lane.b32.xlu0 %v1847, 16
          %v1869 = vpop.permute.xlu0 %1868
          %1870 = vrot.lane.b32.xlu0 %v1848, 16
          %v1871 = vpop.permute.xlu0 %1870
          %1872 = vrot.lane.b32.xlu0 %v1849, 16
          %v1873 = vpop.permute.xlu0 %1872
          %v1882 = vadd.f32 %v1810, %v1859
          %v1883 = vadd.f32 %v1811, %v1861
          %v1884 = vadd.f32 %v1812, %v1863
          %v1885 = vadd.f32 %v1813, %v1865
          %v1886 = vadd.f32 %v1814, %v1867
          %v1887 = vadd.f32 %v1815, %v1869
          %v1888 = vadd.f32 %v1816, %v1871
          %v1889 = vadd.f32 %v1817, %v1873
          %v1890 = vmul.f32 %v1066, %v1683
          %v1891 = vmul.f32 %v1067, %v1685
          %v1892 = vmul.f32 %v1068, %v1687
          %v1893 = vmul.f32 %v1069, %v1689
          %v1894 = vmul.f32 %v1070, %v1691
          %v1895 = vmul.f32 %v1071, %v1693
          %v1896 = vmul.f32 %v1072, %v1695
          %v1897 = vmul.f32 %v1073, %v1697
          %v1898 = vmul.f32 %v1066, %v1715
          %v1899 = vmul.f32 %v1067, %v1717
          %v1900 = vmul.f32 %v1068, %v1719
          %v1901 = vmul.f32 %v1069, %v1721
          %v1902 = vmul.f32 %v1070, %v1723
          %v1903 = vmul.f32 %v1071, %v1725
          %v1904 = vmul.f32 %v1072, %v1727
          %v1905 = vmul.f32 %v1073, %v1729
          %1914 = vrot.lane.b32.xlu0 %v1898, 112
          %v1915 = vpop.permute.xlu0 %1914
          %1916 = vrot.lane.b32.xlu0 %v1899, 112
          %v1917 = vpop.permute.xlu0 %1916
          %1918 = vrot.lane.b32.xlu0 %v1900, 112
          %v1919 = vpop.permute.xlu0 %1918
          %1920 = vrot.lane.b32.xlu0 %v1901, 112
          %v1921 = vpop.permute.xlu0 %1920
          %1922 = vrot.lane.b32.xlu0 %v1902, 112
          %v1923 = vpop.permute.xlu0 %1922
          %1924 = vrot.lane.b32.xlu0 %v1903, 112
          %v1925 = vpop.permute.xlu0 %1924
          %1926 = vrot.lane.b32.xlu0 %v1904, 112
          %v1927 = vpop.permute.xlu0 %1926
          %1928 = vrot.lane.b32.xlu0 %v1905, 112
          %v1929 = vpop.permute.xlu0 %1928
          %v1938 = vsub.f32 %v1890, %v1915
          %v1939 = vsub.f32 %v1891, %v1917
          %v1940 = vsub.f32 %v1892, %v1919
          %v1941 = vsub.f32 %v1893, %v1921
          %v1942 = vsub.f32 %v1894, %v1923
          %v1943 = vsub.f32 %v1895, %v1925
          %v1944 = vsub.f32 %v1896, %v1927
          %v1945 = vsub.f32 %v1897, %v1929
          %v1946 = vmul.f32 %v1066, %v1787
          %v1947 = vmul.f32 %v1067, %v1789
          %v1948 = vmul.f32 %v1068, %v1791
          %v1949 = vmul.f32 %v1069, %v1793
          %v1950 = vmul.f32 %v1070, %v1795
          %v1951 = vmul.f32 %v1071, %v1797
          %v1952 = vmul.f32 %v1072, %v1799
          %v1953 = vmul.f32 %v1073, %v1801
          %v1954 = vmul.f32 %v1066, %v1819
          %v1955 = vmul.f32 %v1067, %v1821
          %v1956 = vmul.f32 %v1068, %v1823
          %v1957 = vmul.f32 %v1069, %v1825
          %v1958 = vmul.f32 %v1070, %v1827
          %v1959 = vmul.f32 %v1071, %v1829
          %v1960 = vmul.f32 %v1072, %v1831
          %v1961 = vmul.f32 %v1073, %v1833
          %1970 = vrot.lane.b32.xlu0 %v1954, 16
          %v1971 = vpop.permute.xlu0 %1970
          %1972 = vrot.lane.b32.xlu0 %v1955, 16
          %v1973 = vpop.permute.xlu0 %1972
          %1974 = vrot.lane.b32.xlu0 %v1956, 16
          %v1975 = vpop.permute.xlu0 %1974
          %1976 = vrot.lane.b32.xlu0 %v1957, 16
          %v1977 = vpop.permute.xlu0 %1976
          %1978 = vrot.lane.b32.xlu0 %v1958, 16
          %v1979 = vpop.permute.xlu0 %1978
          %1980 = vrot.lane.b32.xlu0 %v1959, 16
          %v1981 = vpop.permute.xlu0 %1980
          %1982 = vrot.lane.b32.xlu0 %v1960, 16
          %v1983 = vpop.permute.xlu0 %1982
          %1984 = vrot.lane.b32.xlu0 %v1961, 16
          %v1985 = vpop.permute.xlu0 %1984
          %v1994 = vadd.f32 %v1946, %v1971
          %v1995 = vadd.f32 %v1947, %v1973
          %v1996 = vadd.f32 %v1948, %v1975
          %v1997 = vadd.f32 %v1949, %v1977
          %v1998 = vadd.f32 %v1950, %v1979
          %v1999 = vadd.f32 %v1951, %v1981
          %v2000 = vadd.f32 %v1952, %v1983
          %v2001 = vadd.f32 %v1953, %v1985
          %2002 = vrot.lane.b32.xlu0 %v915, 96
          %v2003 = vpop.permute.xlu0 %2002
          %2004 = vrot.lane.b32.xlu0 %v916, 96
          %v2005 = vpop.permute.xlu0 %2004
          %2006 = vrot.lane.b32.xlu0 %v917, 96
          %v2007 = vpop.permute.xlu0 %2006
          %2008 = vrot.lane.b32.xlu0 %v918, 96
          %v2009 = vpop.permute.xlu0 %2008
          %2010 = vrot.lane.b32.xlu0 %v919, 96
          %v2011 = vpop.permute.xlu0 %2010
          %2012 = vrot.lane.b32.xlu0 %v920, 96
          %v2013 = vpop.permute.xlu0 %2012
          %2014 = vrot.lane.b32.xlu0 %v921, 96
          %v2015 = vpop.permute.xlu0 %2014
          %2016 = vrot.lane.b32.xlu0 %v922, 96
          %v2017 = vpop.permute.xlu0 %2016
          %v2026 = vmul.f32 %v995, %v2003
          %v2027 = vmul.f32 %v996, %v2005
          %v2028 = vmul.f32 %v997, %v2007
          %v2029 = vmul.f32 %v998, %v2009
          %v2030 = vmul.f32 %v999, %v2011
          %v2031 = vmul.f32 %v1000, %v2013
          %v2032 = vmul.f32 %v1001, %v2015
          %v2033 = vmul.f32 %v1002, %v2017
          %2034 = vrot.lane.b32.xlu0 %v923, 112
          %v2035 = vpop.permute.xlu0 %2034
          %2036 = vrot.lane.b32.xlu0 %v924, 112
          %v2037 = vpop.permute.xlu0 %2036
          %2038 = vrot.lane.b32.xlu0 %v925, 112
          %v2039 = vpop.permute.xlu0 %2038
          %2040 = vrot.lane.b32.xlu0 %v926, 112
          %v2041 = vpop.permute.xlu0 %2040
          %2042 = vrot.lane.b32.xlu0 %v927, 112
          %v2043 = vpop.permute.xlu0 %2042
          %2044 = vrot.lane.b32.xlu0 %v928, 112
          %v2045 = vpop.permute.xlu0 %2044
          %2046 = vrot.lane.b32.xlu0 %v929, 112
          %v2047 = vpop.permute.xlu0 %2046
          %2048 = vrot.lane.b32.xlu0 %v930, 112
          %v2049 = vpop.permute.xlu0 %2048
          %v2058 = vmul.f32 %v995, %v2035
          %v2059 = vmul.f32 %v996, %v2037
          %v2060 = vmul.f32 %v997, %v2039
          %v2061 = vmul.f32 %v998, %v2041
          %v2062 = vmul.f32 %v999, %v2043
          %v2063 = vmul.f32 %v1000, %v2045
          %v2064 = vmul.f32 %v1001, %v2047
          %v2065 = vmul.f32 %v1002, %v2049
          %2074 = vrot.lane.b32.xlu0 %v2058, 112
          %v2075 = vpop.permute.xlu0 %2074
          %2076 = vrot.lane.b32.xlu0 %v2059, 112
          %v2077 = vpop.permute.xlu0 %2076
          %2078 = vrot.lane.b32.xlu0 %v2060, 112
          %v2079 = vpop.permute.xlu0 %2078
          %2080 = vrot.lane.b32.xlu0 %v2061, 112
          %v2081 = vpop.permute.xlu0 %2080
          %2082 = vrot.lane.b32.xlu0 %v2062, 112
          %v2083 = vpop.permute.xlu0 %2082
          %2084 = vrot.lane.b32.xlu0 %v2063, 112
          %v2085 = vpop.permute.xlu0 %2084
          %2086 = vrot.lane.b32.xlu0 %v2064, 112
          %v2087 = vpop.permute.xlu0 %2086
          %2088 = vrot.lane.b32.xlu0 %v2065, 112
          %v2089 = vpop.permute.xlu0 %2088
          %v2098 = vsub.f32 %v2026, %v2075
          %v2099 = vsub.f32 %v2027, %v2077
          %v2100 = vsub.f32 %v2028, %v2079
          %v2101 = vsub.f32 %v2029, %v2081
          %v2102 = vsub.f32 %v2030, %v2083
          %v2103 = vsub.f32 %v2031, %v2085
          %v2104 = vsub.f32 %v2032, %v2087
          %v2105 = vsub.f32 %v2033, %v2089
          %2106 = vrot.lane.b32.xlu0 %v915, 112
          %v2107 = vpop.permute.xlu0 %2106
          %2108 = vrot.lane.b32.xlu0 %v916, 112
          %v2109 = vpop.permute.xlu0 %2108
          %2110 = vrot.lane.b32.xlu0 %v917, 112
          %v2111 = vpop.permute.xlu0 %2110
          %2112 = vrot.lane.b32.xlu0 %v918, 112
          %v2113 = vpop.permute.xlu0 %2112
          %2114 = vrot.lane.b32.xlu0 %v919, 112
          %v2115 = vpop.permute.xlu0 %2114
          %2116 = vrot.lane.b32.xlu0 %v920, 112
          %v2117 = vpop.permute.xlu0 %2116
          %2118 = vrot.lane.b32.xlu0 %v921, 112
          %v2119 = vpop.permute.xlu0 %2118
          %2120 = vrot.lane.b32.xlu0 %v922, 112
          %v2121 = vpop.permute.xlu0 %2120
          %v2130 = vmul.f32 %v995, %v2107
          %v2131 = vmul.f32 %v996, %v2109
          %v2132 = vmul.f32 %v997, %v2111
          %v2133 = vmul.f32 %v998, %v2113
          %v2134 = vmul.f32 %v999, %v2115
          %v2135 = vmul.f32 %v1000, %v2117
          %v2136 = vmul.f32 %v1001, %v2119
          %v2137 = vmul.f32 %v1002, %v2121
          %2138 = vrot.lane.b32.xlu0 %v923, 96
          %v2139 = vpop.permute.xlu0 %2138
          %2140 = vrot.lane.b32.xlu0 %v924, 96
          %v2141 = vpop.permute.xlu0 %2140
          %2142 = vrot.lane.b32.xlu0 %v925, 96
          %v2143 = vpop.permute.xlu0 %2142
          %2144 = vrot.lane.b32.xlu0 %v926, 96
          %v2145 = vpop.permute.xlu0 %2144
          %2146 = vrot.lane.b32.xlu0 %v927, 96
          %v2147 = vpop.permute.xlu0 %2146
          %2148 = vrot.lane.b32.xlu0 %v928, 96
          %v2149 = vpop.permute.xlu0 %2148
          %2150 = vrot.lane.b32.xlu0 %v929, 96
          %v2151 = vpop.permute.xlu0 %2150
          %2152 = vrot.lane.b32.xlu0 %v930, 96
          %v2153 = vpop.permute.xlu0 %2152
          %v2162 = vmul.f32 %v995, %v2139
          %v2163 = vmul.f32 %v996, %v2141
          %v2164 = vmul.f32 %v997, %v2143
          %v2165 = vmul.f32 %v998, %v2145
          %v2166 = vmul.f32 %v999, %v2147
          %v2167 = vmul.f32 %v1000, %v2149
          %v2168 = vmul.f32 %v1001, %v2151
          %v2169 = vmul.f32 %v1002, %v2153
          %2178 = vrot.lane.b32.xlu0 %v2162, 16
          %v2179 = vpop.permute.xlu0 %2178
          %2180 = vrot.lane.b32.xlu0 %v2163, 16
          %v2181 = vpop.permute.xlu0 %2180
          %2182 = vrot.lane.b32.xlu0 %v2164, 16
          %v2183 = vpop.permute.xlu0 %2182
          %2184 = vrot.lane.b32.xlu0 %v2165, 16
          %v2185 = vpop.permute.xlu0 %2184
          %2186 = vrot.lane.b32.xlu0 %v2166, 16
          %v2187 = vpop.permute.xlu0 %2186
          %2188 = vrot.lane.b32.xlu0 %v2167, 16
          %v2189 = vpop.permute.xlu0 %2188
          %2190 = vrot.lane.b32.xlu0 %v2168, 16
          %v2191 = vpop.permute.xlu0 %2190
          %2192 = vrot.lane.b32.xlu0 %v2169, 16
          %v2193 = vpop.permute.xlu0 %2192
          %v2202 = vadd.f32 %v2130, %v2179
          %v2203 = vadd.f32 %v2131, %v2181
          %v2204 = vadd.f32 %v2132, %v2183
          %v2205 = vadd.f32 %v2133, %v2185
          %v2206 = vadd.f32 %v2134, %v2187
          %v2207 = vadd.f32 %v2135, %v2189
          %v2208 = vadd.f32 %v2136, %v2191
          %v2209 = vadd.f32 %v2137, %v2193
          %v2210 = vmul.f32 %v1066, %v2003
          %v2211 = vmul.f32 %v1067, %v2005
          %v2212 = vmul.f32 %v1068, %v2007
          %v2213 = vmul.f32 %v1069, %v2009
          %v2214 = vmul.f32 %v1070, %v2011
          %v2215 = vmul.f32 %v1071, %v2013
          %v2216 = vmul.f32 %v1072, %v2015
          %v2217 = vmul.f32 %v1073, %v2017
          %v2218 = vmul.f32 %v1066, %v2035
          %v2219 = vmul.f32 %v1067, %v2037
          %v2220 = vmul.f32 %v1068, %v2039
          %v2221 = vmul.f32 %v1069, %v2041
          %v2222 = vmul.f32 %v1070, %v2043
          %v2223 = vmul.f32 %v1071, %v2045
          %v2224 = vmul.f32 %v1072, %v2047
          %v2225 = vmul.f32 %v1073, %v2049
          %2234 = vrot.lane.b32.xlu0 %v2218, 112
          %v2235 = vpop.permute.xlu0 %2234
          %2236 = vrot.lane.b32.xlu0 %v2219, 112
          %v2237 = vpop.permute.xlu0 %2236
          %2238 = vrot.lane.b32.xlu0 %v2220, 112
          %v2239 = vpop.permute.xlu0 %2238
          %2240 = vrot.lane.b32.xlu0 %v2221, 112
          %v2241 = vpop.permute.xlu0 %2240
          %2242 = vrot.lane.b32.xlu0 %v2222, 112
          %v2243 = vpop.permute.xlu0 %2242
          %2244 = vrot.lane.b32.xlu0 %v2223, 112
          %v2245 = vpop.permute.xlu0 %2244
          %2246 = vrot.lane.b32.xlu0 %v2224, 112
          %v2247 = vpop.permute.xlu0 %2246
          %2248 = vrot.lane.b32.xlu0 %v2225, 112
          %v2249 = vpop.permute.xlu0 %2248
          %v2258 = vsub.f32 %v2210, %v2235
          %v2259 = vsub.f32 %v2211, %v2237
          %v2260 = vsub.f32 %v2212, %v2239
          %v2261 = vsub.f32 %v2213, %v2241
          %v2262 = vsub.f32 %v2214, %v2243
          %v2263 = vsub.f32 %v2215, %v2245
          %v2264 = vsub.f32 %v2216, %v2247
          %v2265 = vsub.f32 %v2217, %v2249
          %v2266 = vmul.f32 %v1066, %v2107
          %v2267 = vmul.f32 %v1067, %v2109
          %v2268 = vmul.f32 %v1068, %v2111
          %v2269 = vmul.f32 %v1069, %v2113
          %v2270 = vmul.f32 %v1070, %v2115
          %v2271 = vmul.f32 %v1071, %v2117
          %v2272 = vmul.f32 %v1072, %v2119
          %v2273 = vmul.f32 %v1073, %v2121
          %v2274 = vmul.f32 %v1066, %v2139
          %v2275 = vmul.f32 %v1067, %v2141
          %v2276 = vmul.f32 %v1068, %v2143
          %v2277 = vmul.f32 %v1069, %v2145
          %v2278 = vmul.f32 %v1070, %v2147
          %v2279 = vmul.f32 %v1071, %v2149
          %v2280 = vmul.f32 %v1072, %v2151
          %v2281 = vmul.f32 %v1073, %v2153
          %2290 = vrot.lane.b32.xlu0 %v2274, 16
          %v2291 = vpop.permute.xlu0 %2290
          %2292 = vrot.lane.b32.xlu0 %v2275, 16
          %v2293 = vpop.permute.xlu0 %2292
          %2294 = vrot.lane.b32.xlu0 %v2276, 16
          %v2295 = vpop.permute.xlu0 %2294
          %2296 = vrot.lane.b32.xlu0 %v2277, 16
          %v2297 = vpop.permute.xlu0 %2296
          %2298 = vrot.lane.b32.xlu0 %v2278, 16
          %v2299 = vpop.permute.xlu0 %2298
          %2300 = vrot.lane.b32.xlu0 %v2279, 16
          %v2301 = vpop.permute.xlu0 %2300
          %2302 = vrot.lane.b32.xlu0 %v2280, 16
          %v2303 = vpop.permute.xlu0 %2302
          %2304 = vrot.lane.b32.xlu0 %v2281, 16
          %v2305 = vpop.permute.xlu0 %2304
          %v2314 = vadd.f32 %v2266, %v2291
          %v2315 = vadd.f32 %v2267, %v2293
          %v2316 = vadd.f32 %v2268, %v2295
          %v2317 = vadd.f32 %v2269, %v2297
          %v2318 = vadd.f32 %v2270, %v2299
          %v2319 = vadd.f32 %v2271, %v2301
          %v2320 = vadd.f32 %v2272, %v2303
          %v2321 = vadd.f32 %v2273, %v2305
          %vm2322 = vcmask 130048
          %v2323 = vsel %vm2322, %v1154, %v1242
          %v2324 = vsel %vm2322, %v1155, %v1243
          %v2325 = vsel %vm2322, %v1156, %v1244
          %v2326 = vsel %vm2322, %v1157, %v1245
          %v2327 = vsel %vm2322, %v1158, %v1246
          %v2328 = vsel %vm2322, %v1159, %v1247
          %v2329 = vsel %vm2322, %v1160, %v1248
          %v2330 = vsel %vm2322, %v1161, %v1249
          %vm2331 = vcmask 261120
          %v2332 = vsel %vm2331, %v2323, %v1458
          %v2333 = vsel %vm2331, %v2324, %v1459
          %v2334 = vsel %vm2331, %v2325, %v1460
          %v2335 = vsel %vm2331, %v2326, %v1461
          %v2336 = vsel %vm2331, %v2327, %v1462
          %v2337 = vsel %vm2331, %v2328, %v1463
          %v2338 = vsel %vm2331, %v2329, %v1464
          %v2339 = vsel %vm2331, %v2330, %v1465
          %vm2340 = vcmask 392192
          %v2341 = vsel %vm2340, %v2332, %v1562
          %v2342 = vsel %vm2340, %v2333, %v1563
          %v2343 = vsel %vm2340, %v2334, %v1564
          %v2344 = vsel %vm2340, %v2335, %v1565
          %v2345 = vsel %vm2340, %v2336, %v1566
          %v2346 = vsel %vm2340, %v2337, %v1567
          %v2347 = vsel %vm2340, %v2338, %v1568
          %v2348 = vsel %vm2340, %v2339, %v1569
          %vm2349 = vcmask 523264
          %v2350 = vsel %vm2349, %v2341, %v1778
          %v2351 = vsel %vm2349, %v2342, %v1779
          %v2352 = vsel %vm2349, %v2343, %v1780
          %v2353 = vsel %vm2349, %v2344, %v1781
          %v2354 = vsel %vm2349, %v2345, %v1782
          %v2355 = vsel %vm2349, %v2346, %v1783
          %v2356 = vsel %vm2349, %v2347, %v1784
          %v2357 = vsel %vm2349, %v2348, %v1785
          %vm2358 = vcmask 654336
          %v2359 = vsel %vm2358, %v2350, %v1882
          %v2360 = vsel %vm2358, %v2351, %v1883
          %v2361 = vsel %vm2358, %v2352, %v1884
          %v2362 = vsel %vm2358, %v2353, %v1885
          %v2363 = vsel %vm2358, %v2354, %v1886
          %v2364 = vsel %vm2358, %v2355, %v1887
          %v2365 = vsel %vm2358, %v2356, %v1888
          %v2366 = vsel %vm2358, %v2357, %v1889
          %vm2367 = vcmask 785408
          %v2368 = vsel %vm2367, %v2359, %v2098
          %v2369 = vsel %vm2367, %v2360, %v2099
          %v2370 = vsel %vm2367, %v2361, %v2100
          %v2371 = vsel %vm2367, %v2362, %v2101
          %v2372 = vsel %vm2367, %v2363, %v2102
          %v2373 = vsel %vm2367, %v2364, %v2103
          %v2374 = vsel %vm2367, %v2365, %v2104
          %v2375 = vsel %vm2367, %v2366, %v2105
          %vm2376 = vcmask 916480
          %v2377 = vsel %vm2376, %v2368, %v2202
          %v2378 = vsel %vm2376, %v2369, %v2203
          %v2379 = vsel %vm2376, %v2370, %v2204
          %v2380 = vsel %vm2376, %v2371, %v2205
          %v2381 = vsel %vm2376, %v2372, %v2206
          %v2382 = vsel %vm2376, %v2373, %v2207
          %v2383 = vsel %vm2376, %v2374, %v2208
          %v2384 = vsel %vm2376, %v2375, %v2209
          %2385 = vst [vmem:[%s429] sm:$0xff] %v2377
          %2386 = vst [vmem:[%s429 + $0x8] sm:$0xff] %v2378
          %2387 = vst [vmem:[%s429 + $0x10] sm:$0xff] %v2379
          %2388 = vst [vmem:[%s429 + $0x18] sm:$0xff] %v2380
          %2389 = vst [vmem:[%s429 + $0x20] sm:$0xff] %v2381
          %2390 = vst [vmem:[%s429 + $0x28] sm:$0xff] %v2382
          %2391 = vst [vmem:[%s429 + $0x30] sm:$0xff] %v2383
          %2392 = vst [vmem:[%s429 + $0x38] sm:$0xff] %v2384
          %v2393 = vsel %vm2322, %v1298, %v1354
          %v2394 = vsel %vm2322, %v1299, %v1355
          %v2395 = vsel %vm2322, %v1300, %v1356
          %v2396 = vsel %vm2322, %v1301, %v1357
          %v2397 = vsel %vm2322, %v1302, %v1358
          %v2398 = vsel %vm2322, %v1303, %v1359
          %v2399 = vsel %vm2322, %v1304, %v1360
          %v2400 = vsel %vm2322, %v1305, %v1361
          %v2401 = vsel %vm2331, %v2393, %v1618
          %v2402 = vsel %vm2331, %v2394, %v1619
          %v2403 = vsel %vm2331, %v2395, %v1620
          %v2404 = vsel %vm2331, %v2396, %v1621
          %v2405 = vsel %vm2331, %v2397, %v1622
          %v2406 = vsel %vm2331, %v2398, %v1623
          %v2407 = vsel %vm2331, %v2399, %v1624
          %v2408 = vsel %vm2331, %v2400, %v1625
          %v2409 = vsel %vm2340, %v2401, %v1674
          %v2410 = vsel %vm2340, %v2402, %v1675
          %v2411 = vsel %vm2340, %v2403, %v1676
          %v2412 = vsel %vm2340, %v2404, %v1677
          %v2413 = vsel %vm2340, %v2405, %v1678
          %v2414 = vsel %vm2340, %v2406, %v1679
          %v2415 = vsel %vm2340, %v2407, %v1680
          %v2416 = vsel %vm2340, %v2408, %v1681
          %v2417 = vsel %vm2349, %v2409, %v1938
          %v2418 = vsel %vm2349, %v2410, %v1939
          %v2419 = vsel %vm2349, %v2411, %v1940
          %v2420 = vsel %vm2349, %v2412, %v1941
          %v2421 = vsel %vm2349, %v2413, %v1942
          %v2422 = vsel %vm2349, %v2414, %v1943
          %v2423 = vsel %vm2349, %v2415, %v1944
          %v2424 = vsel %vm2349, %v2416, %v1945
          %v2425 = vsel %vm2358, %v2417, %v1994
          %v2426 = vsel %vm2358, %v2418, %v1995
          %v2427 = vsel %vm2358, %v2419, %v1996
          %v2428 = vsel %vm2358, %v2420, %v1997
          %v2429 = vsel %vm2358, %v2421, %v1998
          %v2430 = vsel %vm2358, %v2422, %v1999
          %v2431 = vsel %vm2358, %v2423, %v2000
          %v2432 = vsel %vm2358, %v2424, %v2001
          %v2433 = vsel %vm2367, %v2425, %v2258
          %v2434 = vsel %vm2367, %v2426, %v2259
          %v2435 = vsel %vm2367, %v2427, %v2260
          %v2436 = vsel %vm2367, %v2428, %v2261
          %v2437 = vsel %vm2367, %v2429, %v2262
          %v2438 = vsel %vm2367, %v2430, %v2263
          %v2439 = vsel %vm2367, %v2431, %v2264
          %v2440 = vsel %vm2367, %v2432, %v2265
          %v2441 = vsel %vm2376, %v2433, %v2314
          %v2442 = vsel %vm2376, %v2434, %v2315
          %v2443 = vsel %vm2376, %v2435, %v2316
          %v2444 = vsel %vm2376, %v2436, %v2317
          %v2445 = vsel %vm2376, %v2437, %v2318
          %v2446 = vsel %vm2376, %v2438, %v2319
          %v2447 = vsel %vm2376, %v2439, %v2320
          %v2448 = vsel %vm2376, %v2440, %v2321
          %2449 = vst [vmem:[%s436] sm:$0xff] %v2441
          %2450 = vst [vmem:[%s436 + $0x8] sm:$0xff] %v2442
          %2451 = vst [vmem:[%s436 + $0x10] sm:$0xff] %v2443
          %2452 = vst [vmem:[%s436 + $0x18] sm:$0xff] %v2444
          %2453 = vst [vmem:[%s436 + $0x20] sm:$0xff] %v2445
          %2454 = vst [vmem:[%s436 + $0x28] sm:$0xff] %v2446
          %2455 = vst [vmem:[%s436 + $0x30] sm:$0xff] %v2447
          %2456 = vst [vmem:[%s436 + $0x38] sm:$0xff] %v2448
          %2457 = vst [vmem:[%s443] sm:$0xff] %v893
          %2458 = vst [vmem:[%s443 + $0x8] sm:$0xff] %v896
          %2459 = vst [vmem:[%s443 + $0x10] sm:$0xff] %v899
          %2460 = vst [vmem:[%s443 + $0x18] sm:$0xff] %v902
          %2461 = vst [vmem:[%s443 + $0x20] sm:$0xff] %v905
          %2462 = vst [vmem:[%s443 + $0x28] sm:$0xff] %v908
          %2463 = vst [vmem:[%s443 + $0x30] sm:$0xff] %v911
          %2464 = vst [vmem:[%s443 + $0x38] sm:$0xff] %v914
        $region60: #{tpu_custom_call.1} parent=47 // pred_fallthru
          _
        %s2465 = sand.u32 %s228, 1
        %s2466 = scalar_lea.sflag [#allocation5], %s2465
        %s2467 = sand.u32 %s228, 1
        %s2468 = smul.addr %s2467, 64
        %s2469 = scalar_lea.vmem [#allocation6], %s2468
        %s2470 = sand.u32 %s28, 1
        %s2471 = scalar_lea.sflag [#allocation8], %s2470
        %s2472 = sand.u32 %s256, 1
        %s2473 = smul.addr %s2472, 64
        %s2474 = scalar_lea.vmem [#allocation7], %s2473
        %s2475 = sand.u32 %s28, 1
        %s2476 = scalar_lea.sflag [#allocation8], %s2475
        %s2477 = sand.u32 %s284, 1
        %s2478 = smul.addr %s2477, 64
        %s2479 = scalar_lea.vmem [#allocation9], %s2478
        // Predicated region
        $region61: #{tpu_custom_call.1} parent=47 // pred_check
          %p2480 = pneg %p238
        $region62: #{tpu_custom_call.1} parent=47 // pred_check_branch
          %2482 = sbr.rel (%p2480) target = $region64
        $region63: #{tpu_custom_call.1} parent=47 // pred_region
          %s2483 = smul.u32 8, %s34
          %s2485 = ssub.s32 1024, 1024
          %2486 = vsyncadd %s2466, %s2485
          %s2487 = smul.addr %s33, 8
          %s2488 = sadd.s32 %s2483, %s2487
          %s2489 = smul.addr %s2488, 128
          %s2490 = scalar_lea.hbm %s7, %s2489
          %s2491 = sshll.u32 %s2469, 4
          %s2492 = int_to_ptr.vmem [resolvable:$true] %s2491
          %2497 = dma.vmem_to_hbm [thread:$0]  %s2492, 1024, %s2490, %s2466, 128, 128, 8
        $region64: #{tpu_custom_call.1} parent=47 // pred_fallthru
          _
        // Predicated region
        $region65: #{tpu_custom_call.1} parent=47 // pred_check
          %p2498 = pneg %p266
        $region66: #{tpu_custom_call.1} parent=47 // pred_check_branch
          %2500 = sbr.rel (%p2498) target = $region68
        $region67: #{tpu_custom_call.1} parent=47 // pred_region
          %s2501 = smul.u32 8, %s34
          %s2503 = ssub.s32 1024, 1024
          %2504 = vsyncadd %s2471, %s2503
          %s2505 = smul.addr %s33, 8
          %s2506 = sadd.s32 %s2501, %s2505
          %s2507 = smul.addr %s2506, 128
          %s2508 = scalar_lea.hbm %s8, %s2507
          %s2509 = sshll.u32 %s2474, 4
          %s2510 = int_to_ptr.vmem [resolvable:$true] %s2509
          %2515 = dma.vmem_to_hbm [thread:$0]  %s2510, 1024, %s2508, %s2471, 128, 128, 8
        $region68: #{tpu_custom_call.1} parent=47 // pred_fallthru
          _
        // Predicated region
        $region69: #{tpu_custom_call.1} parent=47 // pred_check
          %p2516 = pneg %p294
        $region70: #{tpu_custom_call.1} parent=47 // pred_check_branch
          %2518 = sbr.rel (%p2516) target = $region72
        $region71: #{tpu_custom_call.1} parent=47 // pred_region
          %s2519 = smul.u32 8, %s34
          %s2521 = ssub.s32 1024, 1024
          %2522 = vsyncadd %s2476, %s2521
          %s2523 = smul.addr %s33, 8
          %s2524 = sadd.s32 %s2519, %s2523
          %s2525 = smul.addr %s2524, 128
          %s2526 = scalar_lea.hbm %s9, %s2525
          %s2527 = sshll.u32 %s2479, 4
          %s2528 = int_to_ptr.vmem [resolvable:$true] %s2527
          %2533 = dma.vmem_to_hbm [thread:$0]  %s2528, 1024, %s2526, %s2476, 128, 128, 8
        $region72: #{tpu_custom_call.1} parent=47 // pred_fallthru
          _
      $region48: #{tpu_custom_call.1} parent=5 // pred_fallthru
        _
      %p2534 = scmp.le.s32.totalorder 2, %s23
      // Predicated region
      $region73: #{tpu_custom_call.1} parent=5 // pred_check
        %p2535 = pneg %p2534
      $region74: #{tpu_custom_call.1} parent=5 // pred_check_branch
        %2537 = sbr.rel (%p2535) target = $region76
      $region75: #{tpu_custom_call.1} parent=5 // pred_region
        %s2538 = ssub.s32 %s23, 2
        // Predicated region
        $region77: #{tpu_custom_call.1} parent=75 // pred_check
          %p2539 = pneg %p244
        $region78: #{tpu_custom_call.1} parent=75 // pred_check_branch
          %2541 = sbr.rel (%p2539) target = $region80
        $region79: #{tpu_custom_call.1} parent=75 // pred_region
          %s2542 = sand.u32 %s229, 1
          %s2543 = scalar_lea.sflag [#allocation5], %s2542
          %s2544 = sand.u32 %s229, 1
          %s2545 = smul.addr %s2544, 64
          %s2546 = scalar_lea.vmem [#allocation6], %s2545
          %2547 = dma.done %s2543, 1024
        $region80: #{tpu_custom_call.1} parent=75 // pred_fallthru
          _
        // Predicated region
        $region81: #{tpu_custom_call.1} parent=75 // pred_check
          %p2548 = pneg %p272
        $region82: #{tpu_custom_call.1} parent=75 // pred_check_branch
          %2550 = sbr.rel (%p2548) target = $region84
        $region83: #{tpu_custom_call.1} parent=75 // pred_region
          %s2551 = sand.u32 %s29, 1
          %s2552 = scalar_lea.sflag [#allocation8], %s2551
          %s2553 = sand.u32 %s257, 1
          %s2554 = smul.addr %s2553, 64
          %s2555 = scalar_lea.vmem [#allocation7], %s2554
          %2556 = dma.done %s2552, 1024
        $region84: #{tpu_custom_call.1} parent=75 // pred_fallthru
          _
        // Predicated region
        $region85: #{tpu_custom_call.1} parent=75 // pred_check
          %p2557 = pneg %p300
        $region86: #{tpu_custom_call.1} parent=75 // pred_check_branch
          %2559 = sbr.rel (%p2557) target = $region88
        $region87: #{tpu_custom_call.1} parent=75 // pred_region
          %s2560 = sand.u32 %s29, 1
          %s2561 = scalar_lea.sflag [#allocation8], %s2560
          %s2562 = sand.u32 %s285, 1
          %s2563 = smul.addr %s2562, 64
          %s2564 = scalar_lea.vmem [#allocation9], %s2563
          %2565 = dma.done %s2561, 1024
        $region88: #{tpu_custom_call.1} parent=75 // pred_fallthru
          _
      $region76: #{tpu_custom_call.1} parent=5 // pred_fallthru
        _
    $region6: #{tpu_custom_call.1} parent=1 // loop_footer
      %s27 = sadd.s32 1, %s23
    $region7: #{tpu_custom_call.1} parent=1 // loop_footer_branch
      %22 = sbr.rel target = $region3
    $region8: #{tpu_custom_call.1} parent=1 // loop_exit
      _
    %2566 = vsyncpa [#allocation4], 1
    %s2567 = scalar_lea.sflag [#allocation4], 1
    %2568 = vsyncpa %s2567, 1
    %2569 = vsyncpa [#allocation5], 1
    %s2570 = scalar_lea.sflag [#allocation5], 1
    %2571 = vsyncpa %s2570, 1
    %2572 = vsyncpa [#allocation8], 1
    %s2573 = scalar_lea.sflag [#allocation8], 1
    %2574 = vsyncpa %s2573, 1

</llo_original>
